<compile_context>
chip_gen: v6e
topology: v6e:2x2x1
jax: 0.10.0
libtpu: 0.0.40
codegen_flags: <defaults>
</compile_context>

<pallas_src>
import functools

import numpy as np
import jax
import jax.numpy as jnp
from jax.experimental import pallas as pl
from jax.experimental.pallas import tpu as pltpu

LANE = 128


def _pad_to(v, mult):
    return ((v + mult - 1) // mult) * mult


# ---------------------------------------------------------------------------
# Host-side: convert B-spline coefficients to per-interval power-basis polys.
# ---------------------------------------------------------------------------
def _bspline_to_poly(coef, order, num_knots):
    """Convert BSpline(linspace(0,1,num_knots+2*order), coef, order) to per-interval
    power-basis coefficients in the local coordinate u = y*(m-1) - ell.

    Returns a float32 array of shape (nb*(order+1),), flattened as [interval, power],
    where nb = num_knots - 1 intervals (edge intervals also cover extrapolation).
    """
    k = order
    m = num_knots + 2 * k          # number of knots
    n = m - k - 1                  # number of basis functions actually used
    nb = n - k                     # number of knot intervals
    scale = float(m - 1)
    c = np.asarray(coef, np.float64)[:n]

    us = np.linspace(0.0, 1.0, k + 1)                    # local sample points in u
    V = np.vander(us, k + 1, increasing=True)            # (k+1, k+1)
    poly = np.zeros((nb, k + 1), np.float64)
    for base in range(nb):
        ell = base + k
        ys = (ell + us) / scale
        # de Boor on the FORCED interval `ell` (the polynomial piece extends everywhere).
        d = [np.full_like(ys, c[base + j]) for j in range(k + 1)]
        for r in range(1, k + 1):
            for j in range(k, r - 1, -1):
                t_left = (base + j) / scale
                alpha = (ys - t_left) * scale / (1 + k - r)
                d[j] = (1.0 - alpha) * d[j - 1] + alpha * d[j]
        poly[base] = np.linalg.solve(V, d[k])            # exact (degree-k interpolation)
    return jnp.asarray(poly.reshape(-1), jnp.float32)


# ---------------------------------------------------------------------------
# In-kernel spline evaluation: interval select + Horner (no de Boor, no divides,
# no int round-trip).
# ---------------------------------------------------------------------------
def _spline_poly_eval(y, poly_vals, order, num_knots):
    """Elementwise spline via precomputed per-interval polynomials.

    `poly_vals[base][r]` are scalar coefficients already read from SMEM (hoisted)."""
    k = order
    m = num_knots + 2 * k
    n = m - k - 1
    nb = n - k
    scale = jnp.float32(m - 1)

    ys = y * scale
    pos = jnp.clip(ys, jnp.float32(k), jnp.float32(n - 1))   # clamp -> extrapolation
    ell_f = jnp.floor(pos)                                    # integer-valued float in [k, n-1]
    u = ys - ell_f                                            # local polynomial coordinate

    # Gather the k+1 local polynomial coefficients with a select chain.
    # base-outer / power-inner: only one full-size mask is live at a time.
    ps = [jnp.full_like(y, poly_vals[0][r]) for r in range(k + 1)]
    for base in range(1, nb):
        sel = ell_f == jnp.float32(base + k)
        for r in range(k + 1):
            ps[r] = jnp.where(sel, poly_vals[base][r], ps[r])

    # Horner evaluation: k FMAs.
    acc = ps[k]
    for r in range(k - 1, -1, -1):
        acc = acc * u + ps[r]
    return acc


# ---------------------------------------------------------------------------
# Fused whole-network kernel: one batch tile per grid step, all layers inside.
# ---------------------------------------------------------------------------
def _kan_fused_kernel(*refs, num_hidden, order, num_knots):
    # refs = [x_ref, (w, b, poly) * num_hidden, w_out, b_out, o_ref]
    x_ref = refs[0]
    o_ref = refs[-1]
    w_out_ref = refs[1 + 3 * num_hidden]
    b_out_ref = refs[2 + 3 * num_hidden]
    k = order
    nb = num_knots - 1

    x = x_ref[...]
    for l in range(num_hidden):
        w_ref = refs[1 + 3 * l]
        b_ref = refs[2 + 3 * l]
        c_ref = refs[3 + 3 * l]
        # Hoist all SMEM scalar reads for this layer's polynomial coefficients.
        poly_vals = [[c_ref[b * (k + 1) + r] for r in range(k + 1)] for b in range(nb)]
        y = jnp.dot(x, w_ref[...], preferred_element_type=jnp.float32) + b_ref[...]
        x = _spline_poly_eval(y, poly_vals, order, num_knots)

    o_ref[...] = jnp.dot(x, w_out_ref[...], preferred_element_type=jnp.float32) + b_out_ref[...]


# ---------------------------------------------------------------------------
# Wrapper: padding, batch tiling, pallas_call.
# ---------------------------------------------------------------------------
def _choose_batch_tiling(B, tm_max):
    """Balanced batch tiles: multiple of 8, <= tm_max, >= 2 tiles when possible
    (so v7x's two TensorCores both get work), minimal zero-row padding."""
    b8 = _pad_to(B, 8)
    n_tiles = max(1, -(-b8 // tm_max))
    if b8 >= 16:
        n_tiles = max(n_tiles, 2)
    tm = _pad_to(-(-b8 // n_tiles), 8)
    return tm, tm * n_tiles


def kan_forward(x, hidden, w_out, b_out, *, order, num_knots, tm_max=512):
    """Fused KAN forward. `hidden` is a list of (w, b, coef) with
    w: (in, h), b: (1, h), coef: (num_knots + order,) raw B-spline coefficients."""
    B, d_in = x.shape
    out_size = w_out.shape[1]

    # Lane-pad feature dims (dense MXU tiles, unmasked output stores).
    d_in_p = _pad_to(d_in, LANE)
    out_p = _pad_to(out_size, LANE)

    tm, b_pad = _choose_batch_tiling(B, tm_max)

    x_p = jnp.zeros((b_pad, d_in_p), jnp.float32).at[:B, :d_in].set(x)

    args = [x_p]
    in_specs = [pl.BlockSpec((tm, d_in_p), lambda i: (i, 0))]

    prev_p = d_in_p
    for (w, b, coef) in hidden:
        h = w.shape[1]
        h_p = _pad_to(h, LANE)
        w_p = jnp.zeros((prev_p, h_p), jnp.float32).at[: w.shape[0], :h].set(w)
        b_p = jnp.zeros((1, h_p), jnp.float32).at[:, :h].set(b)
        poly = _bspline_to_poly(coef, order, num_knots)          # (nb*(order+1),)
        args += [w_p, b_p, poly]
        in_specs += [
            pl.BlockSpec(w_p.shape, lambda i: (0, 0)),               # weight resident in VMEM
            pl.BlockSpec(b_p.shape, lambda i: (0, 0)),               # bias resident in VMEM
            pl.BlockSpec(memory_space=pltpu.MemorySpace.SMEM),       # poly coeffs (scalars)
        ]
        prev_p = h_p

    w_out_p = jnp.zeros((prev_p, out_p), jnp.float32).at[: w_out.shape[0], :out_size].set(w_out)
    b_out_p = jnp.zeros((1, out_p), jnp.float32).at[:, :out_size].set(b_out)
    args += [w_out_p, b_out_p]
    in_specs += [
        pl.BlockSpec(w_out_p.shape, lambda i: (0, 0)),
        pl.BlockSpec(b_out_p.shape, lambda i: (0, 0)),
    ]

    kernel = functools.partial(
        _kan_fused_kernel, num_hidden=len(hidden), order=order, num_knots=num_knots
    )

    out = pl.pallas_call(
        kernel,
        out_shape=jax.ShapeDtypeStruct((b_pad, out_p), jnp.float32),
        grid=(b_pad // tm,),
        in_specs=in_specs,
        out_specs=pl.BlockSpec((tm, out_p), lambda i: (i, 0)),
        compiler_params=pltpu.CompilerParams(
            dimension_semantics=("parallel",),      # shard batch tiles across TCs (v7x)
            vmem_limit_bytes=32 * 1024 * 1024,      # explicit (v5e default is 16 MiB)
        ),
    )(*args)

    return out[:B, :out_size]


# ---------------------------------------------------------------------------
# Pure-JAX reference (de Boor, raw coefficients) for correctness checking.
# ---------------------------------------------------------------------------
def _bspline_reference(y, coef, order, num_knots):
    k = order
    m = num_knots + 2 * order
    n = m - k - 1
    scale = jnp.float32(m - 1)
    pos = jnp.clip(y * scale, jnp.float32(k), jnp.float32(n - 1))
    base = jnp.floor(pos).astype(jnp.int32) - k
    d = [jnp.take(coef, base + j) for j in range(k + 1)]
    for r in range(1, k + 1):
        inv_denom = scale / jnp.float32(1 + k - r)
        for j in range(k, r - 1, -1):
            t_left = (base + j).astype(jnp.float32) / scale
            alpha = (y - t_left) * inv_denom
            d[j] = (1.0 - alpha) * d[j - 1] + alpha * d[j]
    return d[k]


class KANPallas:
    """Deterministically-initialized Pallas implementation of the torch KAN module."""

    def __init__(self, input_size, hidden_sizes, output_size, spline_order, num_knots, key):
        self.order = spline_order
        self.num_knots = num_knots
        self.hidden = []
        prev = input_size
        for h in hidden_sizes:
            key, kw, kb, kc = jax.random.split(key, 4)
            bound = 1.0 / (prev ** 0.5)
            w = jax.random.uniform(kw, (prev, h), jnp.float32, -bound, bound)
            b = jax.random.uniform(kb, (1, h), jnp.float32, -bound, bound)
            coef = jax.random.normal(kc, (num_knots + spline_order,), jnp.float32)
            self.hidden.append((w, b, coef))
            prev = h
        key, kw, kb = jax.random.split(key, 3)
        bound = 1.0 / (prev ** 0.5)
        self.w_out = jax.random.uniform(kw, (prev, output_size), jnp.float32, -bound, bound)
        self.b_out = jax.random.uniform(kb, (1, output_size), jnp.float32, -bound, bound)

    def __call__(self, x):
        return kan_forward(
            x, self.hidden, self.w_out, self.b_out,
            order=self.order, num_knots=self.num_knots,
        )

    def reference(self, x):
        for w, b, coef in self.hidden:
            y = x @ w + b
            x = _bspline_reference(y, coef, self.order, self.num_knots)
        return x @ self.w_out + self.b_out


if __name__ == "__main__":
    key = jax.random.PRNGKey(0)
    key, kx = jax.random.split(key)

    input_size, hidden_sizes, output_size = 16, [32, 32], 8
    spline_order, num_knots = 3, 8
    batch = 32                       # -> 2 batch tiles of 16 rows (exercises the grid)

    model = KANPallas(input_size, hidden_sizes, output_size, spline_order, num_knots, key)
    x = jax.random.normal(kx, (batch, input_size), jnp.float32)

    out = model(x)
    jax.block_until_ready(out)

    ref = model.reference(x)
    assert out.shape == (batch, output_size)
    if not jnp.allclose(out, ref, rtol=1e-3, atol=1e-3):
        raise AssertionError("Pallas output does not match pure-JAX reference")

    print("KERNEL_OK")
</pallas_src>

<mosaic_0001>
module attributes {stable_mosaic.version = 11 : i64} {
  func.func @_kan_fused_kernel(%arg0: i32, %arg1: memref<16x128xf32, #tpu.memory_space<vmem>>, %arg2: memref<128x128xf32, #tpu.memory_space<vmem>>, %arg3: memref<1x128xf32, #tpu.memory_space<vmem>>, %arg4: memref<28xf32, #tpu.memory_space<smem>>, %arg5: memref<128x128xf32, #tpu.memory_space<vmem>>, %arg6: memref<1x128xf32, #tpu.memory_space<vmem>>, %arg7: memref<28xf32, #tpu.memory_space<smem>>, %arg8: memref<128x128xf32, #tpu.memory_space<vmem>>, %arg9: memref<1x128xf32, #tpu.memory_space<vmem>>, %arg10: memref<16x128xf32, #tpu.memory_space<vmem>>) attributes {dimension_semantics = [#tpu.dimension_semantics<parallel>], iteration_bounds = array<i64: 2>, scalar_prefetch = 0 : i64, scratch_operands = 0 : i64, tpu.core_type = #tpu.core_type<tc>, window_params = [{transform_indices = @transform_0, window_bounds = array<i64: 16, 128>}, {pipeline_mode = #tpu.pipeline_mode<synchronous>, transform_indices = @transform_1, window_bounds = array<i64: 128, 128>}, {pipeline_mode = #tpu.pipeline_mode<synchronous>, transform_indices = @transform_2, window_bounds = array<i64: 1, 128>}, {transform_indices = @transform_3, window_bounds = array<i64: 28>}, {pipeline_mode = #tpu.pipeline_mode<synchronous>, transform_indices = @transform_4, window_bounds = array<i64: 128, 128>}, {pipeline_mode = #tpu.pipeline_mode<synchronous>, transform_indices = @transform_5, window_bounds = array<i64: 1, 128>}, {transform_indices = @transform_6, window_bounds = array<i64: 28>}, {pipeline_mode = #tpu.pipeline_mode<synchronous>, transform_indices = @transform_7, window_bounds = array<i64: 128, 128>}, {pipeline_mode = #tpu.pipeline_mode<synchronous>, transform_indices = @transform_8, window_bounds = array<i64: 1, 128>}, {transform_indices = @transform_9, window_bounds = array<i64: 16, 128>}]} {
    %c0 = arith.constant 0 : index
    %c0_0 = arith.constant 0 : index
    %0 = vector.load %arg1[%c0, %c0_0] : memref<16x128xf32, #tpu.memory_space<vmem>>, vector<16x128xf32>
    %c0_1 = arith.constant 0 : index
    %1 = memref.load %arg4[%c0_1] : memref<28xf32, #tpu.memory_space<smem>>
    %c1 = arith.constant 1 : index
    %2 = memref.load %arg4[%c1] : memref<28xf32, #tpu.memory_space<smem>>
    %c2 = arith.constant 2 : index
    %3 = memref.load %arg4[%c2] : memref<28xf32, #tpu.memory_space<smem>>
    %c3 = arith.constant 3 : index
    %4 = memref.load %arg4[%c3] : memref<28xf32, #tpu.memory_space<smem>>
    %c4 = arith.constant 4 : index
    %5 = memref.load %arg4[%c4] : memref<28xf32, #tpu.memory_space<smem>>
    %c5 = arith.constant 5 : index
    %6 = memref.load %arg4[%c5] : memref<28xf32, #tpu.memory_space<smem>>
    %c6 = arith.constant 6 : index
    %7 = memref.load %arg4[%c6] : memref<28xf32, #tpu.memory_space<smem>>
    %c7 = arith.constant 7 : index
    %8 = memref.load %arg4[%c7] : memref<28xf32, #tpu.memory_space<smem>>
    %c8 = arith.constant 8 : index
    %9 = memref.load %arg4[%c8] : memref<28xf32, #tpu.memory_space<smem>>
    %c9 = arith.constant 9 : index
    %10 = memref.load %arg4[%c9] : memref<28xf32, #tpu.memory_space<smem>>
    %c10 = arith.constant 10 : index
    %11 = memref.load %arg4[%c10] : memref<28xf32, #tpu.memory_space<smem>>
    %c11 = arith.constant 11 : index
    %12 = memref.load %arg4[%c11] : memref<28xf32, #tpu.memory_space<smem>>
    %c12 = arith.constant 12 : index
    %13 = memref.load %arg4[%c12] : memref<28xf32, #tpu.memory_space<smem>>
    %c13 = arith.constant 13 : index
    %14 = memref.load %arg4[%c13] : memref<28xf32, #tpu.memory_space<smem>>
    %c14 = arith.constant 14 : index
    %15 = memref.load %arg4[%c14] : memref<28xf32, #tpu.memory_space<smem>>
    %c15 = arith.constant 15 : index
    %16 = memref.load %arg4[%c15] : memref<28xf32, #tpu.memory_space<smem>>
    %c16 = arith.constant 16 : index
    %17 = memref.load %arg4[%c16] : memref<28xf32, #tpu.memory_space<smem>>
    %c17 = arith.constant 17 : index
    %18 = memref.load %arg4[%c17] : memref<28xf32, #tpu.memory_space<smem>>
    %c18 = arith.constant 18 : index
    %19 = memref.load %arg4[%c18] : memref<28xf32, #tpu.memory_space<smem>>
    %c19 = arith.constant 19 : index
    %20 = memref.load %arg4[%c19] : memref<28xf32, #tpu.memory_space<smem>>
    %c20 = arith.constant 20 : index
    %21 = memref.load %arg4[%c20] : memref<28xf32, #tpu.memory_space<smem>>
    %c21 = arith.constant 21 : index
    %22 = memref.load %arg4[%c21] : memref<28xf32, #tpu.memory_space<smem>>
    %c22 = arith.constant 22 : index
    %23 = memref.load %arg4[%c22] : memref<28xf32, #tpu.memory_space<smem>>
    %c23 = arith.constant 23 : index
    %24 = memref.load %arg4[%c23] : memref<28xf32, #tpu.memory_space<smem>>
    %c24 = arith.constant 24 : index
    %25 = memref.load %arg4[%c24] : memref<28xf32, #tpu.memory_space<smem>>
    %c25 = arith.constant 25 : index
    %26 = memref.load %arg4[%c25] : memref<28xf32, #tpu.memory_space<smem>>
    %c26 = arith.constant 26 : index
    %27 = memref.load %arg4[%c26] : memref<28xf32, #tpu.memory_space<smem>>
    %c27 = arith.constant 27 : index
    %28 = memref.load %arg4[%c27] : memref<28xf32, #tpu.memory_space<smem>>
    %c0_2 = arith.constant 0 : index
    %c0_3 = arith.constant 0 : index
    %29 = vector.load %arg2[%c0_2, %c0_3] : memref<128x128xf32, #tpu.memory_space<vmem>>, vector<128x128xf32>
    %cst = arith.constant dense<0.000000e+00> : vector<16x128xf32>
    %30 = tpu.matmul %0, %29, %cst {dimension_numbers = #tpu.dot_dimension_numbers<[1], [0], [0], [1], [0, 0, 1, 1], [], []>} : vector<16x128xf32>, vector<128x128xf32>, vector<16x128xf32> -> vector<16x128xf32>
    %c0_4 = arith.constant 0 : index
    %c0_5 = arith.constant 0 : index
    %31 = vector.load %arg3[%c0_4, %c0_5] : memref<1x128xf32, #tpu.memory_space<vmem>>, vector<1x128xf32>
    %32 = vector.broadcast %31 : vector<1x128xf32> to vector<16x128xf32>
    %33 = arith.addf %30, %32 : vector<16x128xf32>
    %cst_6 = arith.constant 1.300000e+01 : f32
    %34 = vector.broadcast %cst_6 : f32 to vector<16x128xf32>
    %35 = arith.mulf %33, %34 : vector<16x128xf32>
    %cst_7 = arith.constant 3.000000e+00 : f32
    %cst_8 = arith.constant 9.000000e+00 : f32
    %36 = vector.broadcast %cst_7 : f32 to vector<16x128xf32>
    %37 = arith.maximumf %36, %35 : vector<16x128xf32>
    %38 = vector.broadcast %cst_8 : f32 to vector<16x128xf32>
    %39 = arith.minimumf %38, %37 : vector<16x128xf32>
    %40 = math.floor %39 : vector<16x128xf32>
    %41 = arith.subf %35, %40 : vector<16x128xf32>
    %42 = vector.broadcast %1 : f32 to vector<16x128xf32>
    %43 = vector.broadcast %2 : f32 to vector<16x128xf32>
    %44 = vector.broadcast %3 : f32 to vector<16x128xf32>
    %45 = vector.broadcast %4 : f32 to vector<16x128xf32>
    %cst_9 = arith.constant 4.000000e+00 : f32
    %46 = vector.broadcast %cst_9 : f32 to vector<16x128xf32>
    %47 = arith.cmpf oeq, %40, %46 : vector<16x128xf32>
    %48 = vector.broadcast %5 : f32 to vector<16x128xf32>
    %49 = arith.select %47, %48, %42 : vector<16x128xi1>, vector<16x128xf32>
    %50 = vector.broadcast %6 : f32 to vector<16x128xf32>
    %51 = arith.select %47, %50, %43 : vector<16x128xi1>, vector<16x128xf32>
    %52 = vector.broadcast %7 : f32 to vector<16x128xf32>
    %53 = arith.select %47, %52, %44 : vector<16x128xi1>, vector<16x128xf32>
    %54 = vector.broadcast %8 : f32 to vector<16x128xf32>
    %55 = arith.select %47, %54, %45 : vector<16x128xi1>, vector<16x128xf32>
    %cst_10 = arith.constant 5.000000e+00 : f32
    %56 = vector.broadcast %cst_10 : f32 to vector<16x128xf32>
    %57 = arith.cmpf oeq, %40, %56 : vector<16x128xf32>
    %58 = vector.broadcast %9 : f32 to vector<16x128xf32>
    %59 = arith.select %57, %58, %49 : vector<16x128xi1>, vector<16x128xf32>
    %60 = vector.broadcast %10 : f32 to vector<16x128xf32>
    %61 = arith.select %57, %60, %51 : vector<16x128xi1>, vector<16x128xf32>
    %62 = vector.broadcast %11 : f32 to vector<16x128xf32>
    %63 = arith.select %57, %62, %53 : vector<16x128xi1>, vector<16x128xf32>
    %64 = vector.broadcast %12 : f32 to vector<16x128xf32>
    %65 = arith.select %57, %64, %55 : vector<16x128xi1>, vector<16x128xf32>
    %cst_11 = arith.constant 6.000000e+00 : f32
    %66 = vector.broadcast %cst_11 : f32 to vector<16x128xf32>
    %67 = arith.cmpf oeq, %40, %66 : vector<16x128xf32>
    %68 = vector.broadcast %13 : f32 to vector<16x128xf32>
    %69 = arith.select %67, %68, %59 : vector<16x128xi1>, vector<16x128xf32>
    %70 = vector.broadcast %14 : f32 to vector<16x128xf32>
    %71 = arith.select %67, %70, %61 : vector<16x128xi1>, vector<16x128xf32>
    %72 = vector.broadcast %15 : f32 to vector<16x128xf32>
    %73 = arith.select %67, %72, %63 : vector<16x128xi1>, vector<16x128xf32>
    %74 = vector.broadcast %16 : f32 to vector<16x128xf32>
    %75 = arith.select %67, %74, %65 : vector<16x128xi1>, vector<16x128xf32>
    %cst_12 = arith.constant 7.000000e+00 : f32
    %76 = vector.broadcast %cst_12 : f32 to vector<16x128xf32>
    %77 = arith.cmpf oeq, %40, %76 : vector<16x128xf32>
    %78 = vector.broadcast %17 : f32 to vector<16x128xf32>
    %79 = arith.select %77, %78, %69 : vector<16x128xi1>, vector<16x128xf32>
    %80 = vector.broadcast %18 : f32 to vector<16x128xf32>
    %81 = arith.select %77, %80, %71 : vector<16x128xi1>, vector<16x128xf32>
    %82 = vector.broadcast %19 : f32 to vector<16x128xf32>
    %83 = arith.select %77, %82, %73 : vector<16x128xi1>, vector<16x128xf32>
    %84 = vector.broadcast %20 : f32 to vector<16x128xf32>
    %85 = arith.select %77, %84, %75 : vector<16x128xi1>, vector<16x128xf32>
    %cst_13 = arith.constant 8.000000e+00 : f32
    %86 = vector.broadcast %cst_13 : f32 to vector<16x128xf32>
    %87 = arith.cmpf oeq, %40, %86 : vector<16x128xf32>
    %88 = vector.broadcast %21 : f32 to vector<16x128xf32>
    %89 = arith.select %87, %88, %79 : vector<16x128xi1>, vector<16x128xf32>
    %90 = vector.broadcast %22 : f32 to vector<16x128xf32>
    %91 = arith.select %87, %90, %81 : vector<16x128xi1>, vector<16x128xf32>
    %92 = vector.broadcast %23 : f32 to vector<16x128xf32>
    %93 = arith.select %87, %92, %83 : vector<16x128xi1>, vector<16x128xf32>
    %94 = vector.broadcast %24 : f32 to vector<16x128xf32>
    %95 = arith.select %87, %94, %85 : vector<16x128xi1>, vector<16x128xf32>
    %cst_14 = arith.constant 9.000000e+00 : f32
    %96 = vector.broadcast %cst_14 : f32 to vector<16x128xf32>
    %97 = arith.cmpf oeq, %40, %96 : vector<16x128xf32>
    %98 = vector.broadcast %25 : f32 to vector<16x128xf32>
    %99 = arith.select %97, %98, %89 : vector<16x128xi1>, vector<16x128xf32>
    %100 = vector.broadcast %26 : f32 to vector<16x128xf32>
    %101 = arith.select %97, %100, %91 : vector<16x128xi1>, vector<16x128xf32>
    %102 = vector.broadcast %27 : f32 to vector<16x128xf32>
    %103 = arith.select %97, %102, %93 : vector<16x128xi1>, vector<16x128xf32>
    %104 = vector.broadcast %28 : f32 to vector<16x128xf32>
    %105 = arith.select %97, %104, %95 : vector<16x128xi1>, vector<16x128xf32>
    %106 = arith.mulf %105, %41 : vector<16x128xf32>
    %107 = arith.addf %106, %103 : vector<16x128xf32>
    %108 = arith.mulf %107, %41 : vector<16x128xf32>
    %109 = arith.addf %108, %101 : vector<16x128xf32>
    %110 = arith.mulf %109, %41 : vector<16x128xf32>
    %111 = arith.addf %110, %99 : vector<16x128xf32>
    %c0_15 = arith.constant 0 : index
    %112 = memref.load %arg7[%c0_15] : memref<28xf32, #tpu.memory_space<smem>>
    %c1_16 = arith.constant 1 : index
    %113 = memref.load %arg7[%c1_16] : memref<28xf32, #tpu.memory_space<smem>>
    %c2_17 = arith.constant 2 : index
    %114 = memref.load %arg7[%c2_17] : memref<28xf32, #tpu.memory_space<smem>>
    %c3_18 = arith.constant 3 : index
    %115 = memref.load %arg7[%c3_18] : memref<28xf32, #tpu.memory_space<smem>>
    %c4_19 = arith.constant 4 : index
    %116 = memref.load %arg7[%c4_19] : memref<28xf32, #tpu.memory_space<smem>>
    %c5_20 = arith.constant 5 : index
    %117 = memref.load %arg7[%c5_20] : memref<28xf32, #tpu.memory_space<smem>>
    %c6_21 = arith.constant 6 : index
    %118 = memref.load %arg7[%c6_21] : memref<28xf32, #tpu.memory_space<smem>>
    %c7_22 = arith.constant 7 : index
    %119 = memref.load %arg7[%c7_22] : memref<28xf32, #tpu.memory_space<smem>>
    %c8_23 = arith.constant 8 : index
    %120 = memref.load %arg7[%c8_23] : memref<28xf32, #tpu.memory_space<smem>>
    %c9_24 = arith.constant 9 : index
    %121 = memref.load %arg7[%c9_24] : memref<28xf32, #tpu.memory_space<smem>>
    %c10_25 = arith.constant 10 : index
    %122 = memref.load %arg7[%c10_25] : memref<28xf32, #tpu.memory_space<smem>>
    %c11_26 = arith.constant 11 : index
    %123 = memref.load %arg7[%c11_26] : memref<28xf32, #tpu.memory_space<smem>>
    %c12_27 = arith.constant 12 : index
    %124 = memref.load %arg7[%c12_27] : memref<28xf32, #tpu.memory_space<smem>>
    %c13_28 = arith.constant 13 : index
    %125 = memref.load %arg7[%c13_28] : memref<28xf32, #tpu.memory_space<smem>>
    %c14_29 = arith.constant 14 : index
    %126 = memref.load %arg7[%c14_29] : memref<28xf32, #tpu.memory_space<smem>>
    %c15_30 = arith.constant 15 : index
    %127 = memref.load %arg7[%c15_30] : memref<28xf32, #tpu.memory_space<smem>>
    %c16_31 = arith.constant 16 : index
    %128 = memref.load %arg7[%c16_31] : memref<28xf32, #tpu.memory_space<smem>>
    %c17_32 = arith.constant 17 : index
    %129 = memref.load %arg7[%c17_32] : memref<28xf32, #tpu.memory_space<smem>>
    %c18_33 = arith.constant 18 : index
    %130 = memref.load %arg7[%c18_33] : memref<28xf32, #tpu.memory_space<smem>>
    %c19_34 = arith.constant 19 : index
    %131 = memref.load %arg7[%c19_34] : memref<28xf32, #tpu.memory_space<smem>>
    %c20_35 = arith.constant 20 : index
    %132 = memref.load %arg7[%c20_35] : memref<28xf32, #tpu.memory_space<smem>>
    %c21_36 = arith.constant 21 : index
    %133 = memref.load %arg7[%c21_36] : memref<28xf32, #tpu.memory_space<smem>>
    %c22_37 = arith.constant 22 : index
    %134 = memref.load %arg7[%c22_37] : memref<28xf32, #tpu.memory_space<smem>>
    %c23_38 = arith.constant 23 : index
    %135 = memref.load %arg7[%c23_38] : memref<28xf32, #tpu.memory_space<smem>>
    %c24_39 = arith.constant 24 : index
    %136 = memref.load %arg7[%c24_39] : memref<28xf32, #tpu.memory_space<smem>>
    %c25_40 = arith.constant 25 : index
    %137 = memref.load %arg7[%c25_40] : memref<28xf32, #tpu.memory_space<smem>>
    %c26_41 = arith.constant 26 : index
    %138 = memref.load %arg7[%c26_41] : memref<28xf32, #tpu.memory_space<smem>>
    %c27_42 = arith.constant 27 : index
    %139 = memref.load %arg7[%c27_42] : memref<28xf32, #tpu.memory_space<smem>>
    %c0_43 = arith.constant 0 : index
    %c0_44 = arith.constant 0 : index
    %140 = vector.load %arg5[%c0_43, %c0_44] : memref<128x128xf32, #tpu.memory_space<vmem>>, vector<128x128xf32>
    %cst_45 = arith.constant dense<0.000000e+00> : vector<16x128xf32>
    %141 = tpu.matmul %111, %140, %cst_45 {dimension_numbers = #tpu.dot_dimension_numbers<[1], [0], [0], [1], [0, 0, 1, 1], [], []>} : vector<16x128xf32>, vector<128x128xf32>, vector<16x128xf32> -> vector<16x128xf32>
    %c0_46 = arith.constant 0 : index
    %c0_47 = arith.constant 0 : index
    %142 = vector.load %arg6[%c0_46, %c0_47] : memref<1x128xf32, #tpu.memory_space<vmem>>, vector<1x128xf32>
    %143 = vector.broadcast %142 : vector<1x128xf32> to vector<16x128xf32>
    %144 = arith.addf %141, %143 : vector<16x128xf32>
    %cst_48 = arith.constant 1.300000e+01 : f32
    %145 = vector.broadcast %cst_48 : f32 to vector<16x128xf32>
    %146 = arith.mulf %144, %145 : vector<16x128xf32>
    %cst_49 = arith.constant 3.000000e+00 : f32
    %cst_50 = arith.constant 9.000000e+00 : f32
    %147 = vector.broadcast %cst_49 : f32 to vector<16x128xf32>
    %148 = arith.maximumf %147, %146 : vector<16x128xf32>
    %149 = vector.broadcast %cst_50 : f32 to vector<16x128xf32>
    %150 = arith.minimumf %149, %148 : vector<16x128xf32>
    %151 = math.floor %150 : vector<16x128xf32>
    %152 = arith.subf %146, %151 : vector<16x128xf32>
    %153 = vector.broadcast %112 : f32 to vector<16x128xf32>
    %154 = vector.broadcast %113 : f32 to vector<16x128xf32>
    %155 = vector.broadcast %114 : f32 to vector<16x128xf32>
    %156 = vector.broadcast %115 : f32 to vector<16x128xf32>
    %cst_51 = arith.constant 4.000000e+00 : f32
    %157 = vector.broadcast %cst_51 : f32 to vector<16x128xf32>
    %158 = arith.cmpf oeq, %151, %157 : vector<16x128xf32>
    %159 = vector.broadcast %116 : f32 to vector<16x128xf32>
    %160 = arith.select %158, %159, %153 : vector<16x128xi1>, vector<16x128xf32>
    %161 = vector.broadcast %117 : f32 to vector<16x128xf32>
    %162 = arith.select %158, %161, %154 : vector<16x128xi1>, vector<16x128xf32>
    %163 = vector.broadcast %118 : f32 to vector<16x128xf32>
    %164 = arith.select %158, %163, %155 : vector<16x128xi1>, vector<16x128xf32>
    %165 = vector.broadcast %119 : f32 to vector<16x128xf32>
    %166 = arith.select %158, %165, %156 : vector<16x128xi1>, vector<16x128xf32>
    %cst_52 = arith.constant 5.000000e+00 : f32
    %167 = vector.broadcast %cst_52 : f32 to vector<16x128xf32>
    %168 = arith.cmpf oeq, %151, %167 : vector<16x128xf32>
    %169 = vector.broadcast %120 : f32 to vector<16x128xf32>
    %170 = arith.select %168, %169, %160 : vector<16x128xi1>, vector<16x128xf32>
    %171 = vector.broadcast %121 : f32 to vector<16x128xf32>
    %172 = arith.select %168, %171, %162 : vector<16x128xi1>, vector<16x128xf32>
    %173 = vector.broadcast %122 : f32 to vector<16x128xf32>
    %174 = arith.select %168, %173, %164 : vector<16x128xi1>, vector<16x128xf32>
    %175 = vector.broadcast %123 : f32 to vector<16x128xf32>
    %176 = arith.select %168, %175, %166 : vector<16x128xi1>, vector<16x128xf32>
    %cst_53 = arith.constant 6.000000e+00 : f32
    %177 = vector.broadcast %cst_53 : f32 to vector<16x128xf32>
    %178 = arith.cmpf oeq, %151, %177 : vector<16x128xf32>
    %179 = vector.broadcast %124 : f32 to vector<16x128xf32>
    %180 = arith.select %178, %179, %170 : vector<16x128xi1>, vector<16x128xf32>
    %181 = vector.broadcast %125 : f32 to vector<16x128xf32>
    %182 = arith.select %178, %181, %172 : vector<16x128xi1>, vector<16x128xf32>
    %183 = vector.broadcast %126 : f32 to vector<16x128xf32>
    %184 = arith.select %178, %183, %174 : vector<16x128xi1>, vector<16x128xf32>
    %185 = vector.broadcast %127 : f32 to vector<16x128xf32>
    %186 = arith.select %178, %185, %176 : vector<16x128xi1>, vector<16x128xf32>
    %cst_54 = arith.constant 7.000000e+00 : f32
    %187 = vector.broadcast %cst_54 : f32 to vector<16x128xf32>
    %188 = arith.cmpf oeq, %151, %187 : vector<16x128xf32>
    %189 = vector.broadcast %128 : f32 to vector<16x128xf32>
    %190 = arith.select %188, %189, %180 : vector<16x128xi1>, vector<16x128xf32>
    %191 = vector.broadcast %129 : f32 to vector<16x128xf32>
    %192 = arith.select %188, %191, %182 : vector<16x128xi1>, vector<16x128xf32>
    %193 = vector.broadcast %130 : f32 to vector<16x128xf32>
    %194 = arith.select %188, %193, %184 : vector<16x128xi1>, vector<16x128xf32>
    %195 = vector.broadcast %131 : f32 to vector<16x128xf32>
    %196 = arith.select %188, %195, %186 : vector<16x128xi1>, vector<16x128xf32>
    %cst_55 = arith.constant 8.000000e+00 : f32
    %197 = vector.broadcast %cst_55 : f32 to vector<16x128xf32>
    %198 = arith.cmpf oeq, %151, %197 : vector<16x128xf32>
    %199 = vector.broadcast %132 : f32 to vector<16x128xf32>
    %200 = arith.select %198, %199, %190 : vector<16x128xi1>, vector<16x128xf32>
    %201 = vector.broadcast %133 : f32 to vector<16x128xf32>
    %202 = arith.select %198, %201, %192 : vector<16x128xi1>, vector<16x128xf32>
    %203 = vector.broadcast %134 : f32 to vector<16x128xf32>
    %204 = arith.select %198, %203, %194 : vector<16x128xi1>, vector<16x128xf32>
    %205 = vector.broadcast %135 : f32 to vector<16x128xf32>
    %206 = arith.select %198, %205, %196 : vector<16x128xi1>, vector<16x128xf32>
    %cst_56 = arith.constant 9.000000e+00 : f32
    %207 = vector.broadcast %cst_56 : f32 to vector<16x128xf32>
    %208 = arith.cmpf oeq, %151, %207 : vector<16x128xf32>
    %209 = vector.broadcast %136 : f32 to vector<16x128xf32>
    %210 = arith.select %208, %209, %200 : vector<16x128xi1>, vector<16x128xf32>
    %211 = vector.broadcast %137 : f32 to vector<16x128xf32>
    %212 = arith.select %208, %211, %202 : vector<16x128xi1>, vector<16x128xf32>
    %213 = vector.broadcast %138 : f32 to vector<16x128xf32>
    %214 = arith.select %208, %213, %204 : vector<16x128xi1>, vector<16x128xf32>
    %215 = vector.broadcast %139 : f32 to vector<16x128xf32>
    %216 = arith.select %208, %215, %206 : vector<16x128xi1>, vector<16x128xf32>
    %217 = arith.mulf %216, %152 : vector<16x128xf32>
    %218 = arith.addf %217, %214 : vector<16x128xf32>
    %219 = arith.mulf %218, %152 : vector<16x128xf32>
    %220 = arith.addf %219, %212 : vector<16x128xf32>
    %221 = arith.mulf %220, %152 : vector<16x128xf32>
    %222 = arith.addf %221, %210 : vector<16x128xf32>
    %c0_57 = arith.constant 0 : index
    %c0_58 = arith.constant 0 : index
    %223 = vector.load %arg8[%c0_57, %c0_58] : memref<128x128xf32, #tpu.memory_space<vmem>>, vector<128x128xf32>
    %cst_59 = arith.constant dense<0.000000e+00> : vector<16x128xf32>
    %224 = tpu.matmul %222, %223, %cst_59 {dimension_numbers = #tpu.dot_dimension_numbers<[1], [0], [0], [1], [0, 0, 1, 1], [], []>} : vector<16x128xf32>, vector<128x128xf32>, vector<16x128xf32> -> vector<16x128xf32>
    %c0_60 = arith.constant 0 : index
    %c0_61 = arith.constant 0 : index
    %225 = vector.load %arg9[%c0_60, %c0_61] : memref<1x128xf32, #tpu.memory_space<vmem>>, vector<1x128xf32>
    %226 = vector.broadcast %225 : vector<1x128xf32> to vector<16x128xf32>
    %227 = arith.addf %224, %226 : vector<16x128xf32>
    %c0_62 = arith.constant 0 : index
    %c0_63 = arith.constant 0 : index
    %228 = vector.load %arg10[%c0_62, %c0_63] : memref<16x128xf32, #tpu.memory_space<vmem>>, vector<16x128xf32>
    tpu.vector_store %arg10[%c0_62, %c0_63], %227 {strides = array<i32>} : memref<16x128xf32, #tpu.memory_space<vmem>>, vector<16x128xf32>,
    return
  }
  func.func @transform_0(%arg0: i32) -> (i32, i32) {
    %c0_i32 = arith.constant 0 : i32
    %c0_i32_0 = arith.constant 0 : i32
    return %arg0, %c0_i32 : i32, i32
  }
  func.func @transform_1(%arg0: i32) -> (i32, i32) {
    %c0_i32 = arith.constant 0 : i32
    %c0_i32_0 = arith.constant 0 : i32
    %c0_i32_1 = arith.constant 0 : i32
    return %c0_i32, %c0_i32_0 : i32, i32
  }
  func.func @transform_2(%arg0: i32) -> (i32, i32) {
    %c0_i32 = arith.constant 0 : i32
    %c0_i32_0 = arith.constant 0 : i32
    %c0_i32_1 = arith.constant 0 : i32
    return %c0_i32, %c0_i32_0 : i32, i32
  }
  func.func @transform_3(%arg0: i32) -> i32 {
    %c0_i32 = arith.constant 0 : i32
    %c0_i32_0 = arith.constant 0 : i32
    return %c0_i32 : i32
  }
  func.func @transform_4(%arg0: i32) -> (i32, i32) {
    %c0_i32 = arith.constant 0 : i32
    %c0_i32_0 = arith.constant 0 : i32
    %c0_i32_1 = arith.constant 0 : i32
    return %c0_i32, %c0_i32_0 : i32, i32
  }
  func.func @transform_5(%arg0: i32) -> (i32, i32) {
    %c0_i32 = arith.constant 0 : i32
    %c0_i32_0 = arith.constant 0 : i32
    %c0_i32_1 = arith.constant 0 : i32
    return %c0_i32, %c0_i32_0 : i32, i32
  }
  func.func @transform_6(%arg0: i32) -> i32 {
    %c0_i32 = arith.constant 0 : i32
    %c0_i32_0 = arith.constant 0 : i32
    return %c0_i32 : i32
  }
  func.func @transform_7(%arg0: i32) -> (i32, i32) {
    %c0_i32 = arith.constant 0 : i32
    %c0_i32_0 = arith.constant 0 : i32
    %c0_i32_1 = arith.constant 0 : i32
    return %c0_i32, %c0_i32_0 : i32, i32
  }
  func.func @transform_8(%arg0: i32) -> (i32, i32) {
    %c0_i32 = arith.constant 0 : i32
    %c0_i32_0 = arith.constant 0 : i32
    %c0_i32_1 = arith.constant 0 : i32
    return %c0_i32, %c0_i32_0 : i32, i32
  }
  func.func @transform_9(%arg0: i32) -> (i32, i32) {
    %c0_i32 = arith.constant 0 : i32
    %c0_i32_0 = arith.constant 0 : i32
    return %arg0, %c0_i32 : i32, i32
  }
}

</mosaic_0001>

<llo_original>
// kernel: tpu_custom_call.1
$region0: #{tpu_custom_call.1}
  #allocation0 [shape = 'u32[]', space=smem, size = 0x4, offset = 0x4, fixed_abs, tag = 'smem constant byte address 0x4 - core index']
  #allocation1 [shape = 'u32[144,128]{1,0:T(1,128)}', space=vmem, size = 0x12000, scoped, tag = 'internal scratch']
  %s0 = inlined_call_operand.hbm [shape: f32[32,128], index: 0, kind: input, shape index: {}]
  %s1 = inlined_call_operand.hbm [shape: f32[128,128], index: 1, kind: input, shape index: {}]
  %s2 = inlined_call_operand.vmem [shape: f32[1,128], index: 2, kind: input, shape index: {}]
  %s3 = inlined_call_operand.vmem [shape: f32[28], index: 3, kind: input, shape index: {}]
  %s4 = inlined_call_operand.hbm [shape: f32[128,128], index: 4, kind: input, shape index: {}]
  %s5 = inlined_call_operand.vmem [shape: f32[1,128], index: 5, kind: input, shape index: {}]
  %s6 = inlined_call_operand.vmem [shape: f32[28], index: 6, kind: input, shape index: {}]
  %s7 = inlined_call_operand.hbm [shape: f32[128,128], index: 7, kind: input, shape index: {}]
  %s8 = inlined_call_operand.vmem [shape: f32[1,128], index: 8, kind: input, shape index: {}]
  %s9 = inlined_call_operand.hbm [shape: f32[32,128], index: 9, kind: output, shape index: {}]
  %s10 = sld [smem:[#allocation0]]
  $region93: #{tpu_custom_call.1} parent=0
    _
  %s12 = ssub.s32 1, %s10
  %s13 = scalar_select 0, %s12, %s10
  $region1: #{tpu_custom_call.1} parent=0
    #allocation2 [shape = 'u8[16384]{0}', space=vmem, size = 0x4000, scoped, tag = 'input window, operand 0']
    #allocation3 [shape = 's32[2]{0}', space=sflag, size = 0x8, scoped, tag = 'scoped memory for tpu_custom_call.1']
    #allocation4 [shape = 's32[2]{0}', space=sflag, size = 0x8, scoped, tag = 'scoped memory for tpu_custom_call.1']
    #allocation5 [shape = 's32[2]{0}', space=sflag, size = 0x8, scoped, tag = 'scoped memory for tpu_custom_call.1']
    #allocation6 [shape = 'u8[65536]{0}', space=vmem, size = 0x10000, scoped, tag = 'input window, operand 1, single buffered']
    #allocation7 [shape = 's32[1]{0}', space=sflag, size = 0x4, scoped, tag = 'scoped memory for tpu_custom_call.1']
    #allocation8 [shape = 'u8[512]{0}', space=smem, size = 0x200, scoped, tag = 'input window, operand 3, single buffered']
    #allocation9 [shape = 'u8[65536]{0}', space=vmem, size = 0x10000, scoped, tag = 'input window, operand 4, single buffered']
    #allocation10 [shape = 'u8[512]{0}', space=smem, size = 0x200, scoped, tag = 'input window, operand 6, single buffered']
    #allocation11 [shape = 's32[1]{0}', space=sflag, size = 0x4, scoped, tag = 'scoped memory for tpu_custom_call.1']
    #allocation12 [shape = 'u8[65536]{0}', space=vmem, size = 0x10000, scoped, tag = 'input window, operand 7, single buffered']
    #allocation13 [shape = 's32[1]{0}', space=sflag, size = 0x4, scoped, tag = 'scoped memory for tpu_custom_call.1']
    #allocation14 [shape = 'u8[16384]{0}', space=vmem, size = 0x4000, scoped, tag = 'output window, operand 0']
    %14 = vsyncpa [#allocation3], 0
    %s15 = scalar_lea.sflag [#allocation3], 1
    %16 = vsyncpa %s15, 0
    %17 = vsyncpa [#allocation7], 0
    %18 = vsyncpa [#allocation5], 0
    %19 = vsyncpa [#allocation11], 0
    %20 = vsyncpa [#allocation13], 0
    %21 = vsyncpa [#allocation4], 0
    %s22 = scalar_lea.sflag [#allocation4], 1
    %23 = vsyncpa %s22, 0
    loop: start=0, step=1, limit=4
    $region2: #{tpu_custom_call.1} parent=1 // loop_pre_header
      _
    $region3: #{tpu_custom_call.1} parent=1 // loop_header
      %s25 = sphi 0, %s29
      %p26 = scmp.ge.s32.totalorder %s25, 4
      %s35 = sphi 0, %s37
      %s38 = sphi 0, %s35
      %s39 = sphi 0, %s38
      %s55 = sphi 0, %s39
      %s59 = sphi 0, %s59
      %s61 = sphi 0, %s59
      %s62 = sphi 0, %s61
      %s76 = sphi 0, %s62
      %s80 = sphi 0, %s80
      %s82 = sphi 0, %s80
      %s83 = sphi 0, %s82
      %s97 = sphi 0, %s83
      %s101 = sphi 0, %s101
      %s103 = sphi 0, %s101
      %s104 = sphi 0, %s103
      %s118 = sphi 0, %s104
      %s122 = sphi 0, %s122
      %s124 = sphi 0, %s122
      %s125 = sphi 0, %s124
      %s139 = sphi 0, %s125
      %s143 = sphi 0, %s143
      %s145 = sphi 0, %s143
      %s146 = sphi 0, %s145
      %s160 = sphi 0, %s146
      %s164 = sphi 0, %s164
      %s166 = sphi 0, %s164
      %s167 = sphi 0, %s166
      %s181 = sphi 0, %s167
      %s185 = sphi 0, %s185
      %s187 = sphi 0, %s185
      %s188 = sphi 0, %s187
      %s202 = sphi 0, %s188
      %s206 = sphi 0, %s206
      %s208 = sphi 0, %s206
      %s209 = sphi 0, %s208
      %s223 = sphi 0, %s209
      %s229 = sphi 0, %s231
      %s232 = sphi 0, %s229
      %s233 = sphi 0, %s232
      %s249 = sphi 0, %s233
    $region4: #{tpu_custom_call.1} parent=1 // loop_header_branch
      %28 = sbr.rel (%p26) target = $region8
    $region5: #{tpu_custom_call.1} parent=1 // loop_body
      %s30 = ssub.s32 %s25, 1
      %s31 = ssub.s32 %s25, 2
      %s32 = sadd.s32 %s25, 1
      %s33 = ssub.s32 %s25, %s32
      %p34 = scmp.eq.s32.totalorder %s33, 0
      %s36 = sadd.s32 %s35, 1
      %s37 = scalar_select %p34, %s35, %s36
      %p40 = pneg %p34
      %p41 = scmp.eq.s32.totalorder %s25, 1
      %p42 = por %p40, %p41
      %p43 = scmp.ne.s32.totalorder %s35, %s38
      %p44 = scmp.eq.s32.totalorder %s25, 0
      %p45 = por %p43, %p44
      %p46 = scmp.ne.s32.totalorder %s35, %s38
      %p47 = scmp.eq.s32.totalorder %s30, 1
      %p48 = por %p46, %p47
      %p49 = scmp.ne.s32.totalorder %s38, %s39
      %p50 = scmp.eq.s32.totalorder %s30, 0
      %p51 = por %p49, %p50
      %p52 = scmp.ne.s32.totalorder %s38, %s39
      %p53 = scmp.eq.s32.totalorder %s31, 1
      %p54 = por %p52, %p53
      %p56 = scmp.ne.s32.totalorder %s39, %s55
      %p57 = scmp.eq.s32.totalorder %s31, 0
      %p58 = por %p56, %p57
      %s60 = sadd.s32 %s59, 1
      %p63 = scmp.eq.s32.totalorder %s25, 1
      %p64 = scmp.ne.s32.totalorder %s59, %s61
      %p65 = scmp.eq.s32.totalorder %s25, 0
      %p66 = por %p64, %p65
      %p67 = scmp.ne.s32.totalorder %s59, %s61
      %p68 = scmp.eq.s32.totalorder %s30, 1
      %p69 = por %p67, %p68
      %p70 = scmp.ne.s32.totalorder %s61, %s62
      %p71 = scmp.eq.s32.totalorder %s30, 0
      %p72 = por %p70, %p71
      %p73 = scmp.ne.s32.totalorder %s61, %s62
      %p74 = scmp.eq.s32.totalorder %s31, 1
      %p75 = por %p73, %p74
      %p77 = scmp.ne.s32.totalorder %s62, %s76
      %p78 = scmp.eq.s32.totalorder %s31, 0
      %p79 = por %p77, %p78
      %s81 = sadd.s32 %s80, 1
      %p84 = scmp.eq.s32.totalorder %s25, 1
      %p85 = scmp.ne.s32.totalorder %s80, %s82
      %p86 = scmp.eq.s32.totalorder %s25, 0
      %p87 = por %p85, %p86
      %p88 = scmp.ne.s32.totalorder %s80, %s82
      %p89 = scmp.eq.s32.totalorder %s30, 1
      %p90 = por %p88, %p89
      %p91 = scmp.ne.s32.totalorder %s82, %s83
      %p92 = scmp.eq.s32.totalorder %s30, 0
      %p93 = por %p91, %p92
      %p94 = scmp.ne.s32.totalorder %s82, %s83
      %p95 = scmp.eq.s32.totalorder %s31, 1
      %p96 = por %p94, %p95
      %p98 = scmp.ne.s32.totalorder %s83, %s97
      %p99 = scmp.eq.s32.totalorder %s31, 0
      %p100 = por %p98, %p99
      %s102 = sadd.s32 %s101, 1
      %p105 = scmp.eq.s32.totalorder %s25, 1
      %p106 = scmp.ne.s32.totalorder %s101, %s103
      %p107 = scmp.eq.s32.totalorder %s25, 0
      %p108 = por %p106, %p107
      %p109 = scmp.ne.s32.totalorder %s101, %s103
      %p110 = scmp.eq.s32.totalorder %s30, 1
      %p111 = por %p109, %p110
      %p112 = scmp.ne.s32.totalorder %s103, %s104
      %p113 = scmp.eq.s32.totalorder %s30, 0
      %p114 = por %p112, %p113
      %p115 = scmp.ne.s32.totalorder %s103, %s104
      %p116 = scmp.eq.s32.totalorder %s31, 1
      %p117 = por %p115, %p116
      %p119 = scmp.ne.s32.totalorder %s104, %s118
      %p120 = scmp.eq.s32.totalorder %s31, 0
      %p121 = por %p119, %p120
      %s123 = sadd.s32 %s122, 1
      %p126 = scmp.eq.s32.totalorder %s25, 1
      %p127 = scmp.ne.s32.totalorder %s122, %s124
      %p128 = scmp.eq.s32.totalorder %s25, 0
      %p129 = por %p127, %p128
      %p130 = scmp.ne.s32.totalorder %s122, %s124
      %p131 = scmp.eq.s32.totalorder %s30, 1
      %p132 = por %p130, %p131
      %p133 = scmp.ne.s32.totalorder %s124, %s125
      %p134 = scmp.eq.s32.totalorder %s30, 0
      %p135 = por %p133, %p134
      %p136 = scmp.ne.s32.totalorder %s124, %s125
      %p137 = scmp.eq.s32.totalorder %s31, 1
      %p138 = por %p136, %p137
      %p140 = scmp.ne.s32.totalorder %s125, %s139
      %p141 = scmp.eq.s32.totalorder %s31, 0
      %p142 = por %p140, %p141
      %s144 = sadd.s32 %s143, 1
      %p147 = scmp.eq.s32.totalorder %s25, 1
      %p148 = scmp.ne.s32.totalorder %s143, %s145
      %p149 = scmp.eq.s32.totalorder %s25, 0
      %p150 = por %p148, %p149
      %p151 = scmp.ne.s32.totalorder %s143, %s145
      %p152 = scmp.eq.s32.totalorder %s30, 1
      %p153 = por %p151, %p152
      %p154 = scmp.ne.s32.totalorder %s145, %s146
      %p155 = scmp.eq.s32.totalorder %s30, 0
      %p156 = por %p154, %p155
      %p157 = scmp.ne.s32.totalorder %s145, %s146
      %p158 = scmp.eq.s32.totalorder %s31, 1
      %p159 = por %p157, %p158
      %p161 = scmp.ne.s32.totalorder %s146, %s160
      %p162 = scmp.eq.s32.totalorder %s31, 0
      %p163 = por %p161, %p162
      %s165 = sadd.s32 %s164, 1
      %p168 = scmp.eq.s32.totalorder %s25, 1
      %p169 = scmp.ne.s32.totalorder %s164, %s166
      %p170 = scmp.eq.s32.totalorder %s25, 0
      %p171 = por %p169, %p170
      %p172 = scmp.ne.s32.totalorder %s164, %s166
      %p173 = scmp.eq.s32.totalorder %s30, 1
      %p174 = por %p172, %p173
      %p175 = scmp.ne.s32.totalorder %s166, %s167
      %p176 = scmp.eq.s32.totalorder %s30, 0
      %p177 = por %p175, %p176
      %p178 = scmp.ne.s32.totalorder %s166, %s167
      %p179 = scmp.eq.s32.totalorder %s31, 1
      %p180 = por %p178, %p179
      %p182 = scmp.ne.s32.totalorder %s167, %s181
      %p183 = scmp.eq.s32.totalorder %s31, 0
      %p184 = por %p182, %p183
      %s186 = sadd.s32 %s185, 1
      %p189 = scmp.eq.s32.totalorder %s25, 1
      %p190 = scmp.ne.s32.totalorder %s185, %s187
      %p191 = scmp.eq.s32.totalorder %s25, 0
      %p192 = por %p190, %p191
      %p193 = scmp.ne.s32.totalorder %s185, %s187
      %p194 = scmp.eq.s32.totalorder %s30, 1
      %p195 = por %p193, %p194
      %p196 = scmp.ne.s32.totalorder %s187, %s188
      %p197 = scmp.eq.s32.totalorder %s30, 0
      %p198 = por %p196, %p197
      %p199 = scmp.ne.s32.totalorder %s187, %s188
      %p200 = scmp.eq.s32.totalorder %s31, 1
      %p201 = por %p199, %p200
      %p203 = scmp.ne.s32.totalorder %s188, %s202
      %p204 = scmp.eq.s32.totalorder %s31, 0
      %p205 = por %p203, %p204
      %s207 = sadd.s32 %s206, 1
      %p210 = scmp.eq.s32.totalorder %s25, 1
      %p211 = scmp.ne.s32.totalorder %s206, %s208
      %p212 = scmp.eq.s32.totalorder %s25, 0
      %p213 = por %p211, %p212
      %p214 = scmp.ne.s32.totalorder %s206, %s208
      %p215 = scmp.eq.s32.totalorder %s30, 1
      %p216 = por %p214, %p215
      %p217 = scmp.ne.s32.totalorder %s208, %s209
      %p218 = scmp.eq.s32.totalorder %s30, 0
      %p219 = por %p217, %p218
      %p220 = scmp.ne.s32.totalorder %s208, %s209
      %p221 = scmp.eq.s32.totalorder %s31, 1
      %p222 = por %p220, %p221
      %p224 = scmp.ne.s32.totalorder %s209, %s223
      %p225 = scmp.eq.s32.totalorder %s31, 0
      %p226 = por %p224, %p225
      %s227 = ssub.s32 %s25, %s32
      %p228 = scmp.eq.s32.totalorder %s227, 0
      %s230 = sadd.s32 %s229, 1
      %s231 = scalar_select %p228, %s229, %s230
      %p234 = pneg %p228
      %p235 = scmp.eq.s32.totalorder %s25, 1
      %p236 = por %p234, %p235
      %p237 = scmp.ne.s32.totalorder %s229, %s232
      %p238 = scmp.eq.s32.totalorder %s25, 0
      %p239 = por %p237, %p238
      %p240 = scmp.ne.s32.totalorder %s229, %s232
      %p241 = scmp.eq.s32.totalorder %s30, 1
      %p242 = por %p240, %p241
      %p243 = scmp.ne.s32.totalorder %s232, %s233
      %p244 = scmp.eq.s32.totalorder %s30, 0
      %p245 = por %p243, %p244
      %p246 = scmp.ne.s32.totalorder %s232, %s233
      %p247 = scmp.eq.s32.totalorder %s31, 1
      %p248 = por %p246, %p247
      %p250 = scmp.ne.s32.totalorder %s233, %s249
      %p251 = scmp.eq.s32.totalorder %s31, 0
      %p252 = por %p250, %p251
      %p253 = scmp.le.s32.totalorder 1, %s25
      %p254 = scmp.lt.s32.totalorder %s25, 3
      %p255 = pnand %p253, %p254
      %p256 = pneg %p255
      // Predicated region
      $region9: #{tpu_custom_call.1} parent=5 // pred_check
        _
      $region10: #{tpu_custom_call.1} parent=5 // pred_check_branch
        %258 = sbr.rel (%p255) target = $region12
      $region11: #{tpu_custom_call.1} parent=5 // pred_region
        %s259 = ssub.s32 %s25, 1
        // Predicated region
        $region13: #{tpu_custom_call.1} parent=11 // pred_check
          %p260 = pneg %p72
        $region14: #{tpu_custom_call.1} parent=11 // pred_check_branch
          %262 = sbr.rel (%p260) target = $region16
        $region15: #{tpu_custom_call.1} parent=11 // pred_region
          %s264 = ssub.s32 2048, 2048
          %265 = vsyncadd [#allocation7], %s264
          %s266 = sshll.u32 [#allocation6], 4
          %s267 = int_to_ptr.vmem [resolvable:$true] %s266
          %272 = dma.hbm_to_vmem [thread:$0]  %s1, 2048, %s267, [#allocation7], 128, 128, 8
        $region16: #{tpu_custom_call.1} parent=11 // pred_fallthru
          _
        // Predicated region
        $region17: #{tpu_custom_call.1} parent=11 // pred_check
          %p273 = pneg %p93
        $region18: #{tpu_custom_call.1} parent=11 // pred_check_branch
          %275 = sbr.rel (%p273) target = $region20
        $region19: #{tpu_custom_call.1} parent=11 // pred_region
          _
        $region20: #{tpu_custom_call.1} parent=11 // pred_fallthru
          _
        // Predicated region
        $region21: #{tpu_custom_call.1} parent=11 // pred_check
          %p276 = pneg %p114
        $region22: #{tpu_custom_call.1} parent=11 // pred_check_branch
          %278 = sbr.rel (%p276) target = $region24
        $region23: #{tpu_custom_call.1} parent=11 // pred_region
          %s280 = ssub.s32 16, 16
          %281 = vsyncadd [#allocation5], %s280
          %s283 = sshll.u32 %s3, 4
          %s284 = int_to_ptr.vmem [resolvable:$true] %s283
          %286 = dma.vmem_to_smem %s284, 16, [#allocation8], [#allocation5]
        $region24: #{tpu_custom_call.1} parent=11 // pred_fallthru
          _
        // Predicated region
        $region25: #{tpu_custom_call.1} parent=11 // pred_check
          %p287 = pneg %p135
        $region26: #{tpu_custom_call.1} parent=11 // pred_check_branch
          %289 = sbr.rel (%p287) target = $region28
        $region27: #{tpu_custom_call.1} parent=11 // pred_region
          %s291 = ssub.s32 2048, 2048
          %292 = vsyncadd [#allocation7], %s291
          %s293 = sshll.u32 [#allocation9], 4
          %s294 = int_to_ptr.vmem [resolvable:$true] %s293
          %299 = dma.hbm_to_vmem [thread:$0]  %s4, 2048, %s294, [#allocation7], 128, 128, 8
        $region28: #{tpu_custom_call.1} parent=11 // pred_fallthru
          _
        // Predicated region
        $region29: #{tpu_custom_call.1} parent=11 // pred_check
          %p300 = pneg %p156
        $region30: #{tpu_custom_call.1} parent=11 // pred_check_branch
          %302 = sbr.rel (%p300) target = $region32
        $region31: #{tpu_custom_call.1} parent=11 // pred_region
          _
        $region32: #{tpu_custom_call.1} parent=11 // pred_fallthru
          _
        // Predicated region
        $region33: #{tpu_custom_call.1} parent=11 // pred_check
          %p303 = pneg %p177
        $region34: #{tpu_custom_call.1} parent=11 // pred_check_branch
          %305 = sbr.rel (%p303) target = $region36
        $region35: #{tpu_custom_call.1} parent=11 // pred_region
          %s307 = ssub.s32 16, 16
          %308 = vsyncadd [#allocation11], %s307
          %s310 = sshll.u32 %s6, 4
          %s311 = int_to_ptr.vmem [resolvable:$true] %s310
          %313 = dma.vmem_to_smem %s311, 16, [#allocation10], [#allocation11]
        $region36: #{tpu_custom_call.1} parent=11 // pred_fallthru
          _
        // Predicated region
        $region37: #{tpu_custom_call.1} parent=11 // pred_check
          %p314 = pneg %p198
        $region38: #{tpu_custom_call.1} parent=11 // pred_check_branch
          %316 = sbr.rel (%p314) target = $region40
        $region39: #{tpu_custom_call.1} parent=11 // pred_region
          %s318 = ssub.s32 2048, 2048
          %319 = vsyncadd [#allocation13], %s318
          %s320 = sshll.u32 [#allocation12], 4
          %s321 = int_to_ptr.vmem [resolvable:$true] %s320
          %326 = dma.hbm_to_vmem [thread:$0]  %s7, 2048, %s321, [#allocation13], 128, 128, 8
        $region40: #{tpu_custom_call.1} parent=11 // pred_fallthru
          _
        // Predicated region
        $region41: #{tpu_custom_call.1} parent=11 // pred_check
          %p327 = pneg %p219
        $region42: #{tpu_custom_call.1} parent=11 // pred_check_branch
          %329 = sbr.rel (%p327) target = $region44
        $region43: #{tpu_custom_call.1} parent=11 // pred_region
          _
        $region44: #{tpu_custom_call.1} parent=11 // pred_fallthru
          _
      $region12: #{tpu_custom_call.1} parent=5 // pred_fallthru
        _
      %p330 = scmp.lt.s32.totalorder %s25, 2
      // Predicated region
      $region45: #{tpu_custom_call.1} parent=5 // pred_check
        %p331 = pneg %p330
      $region46: #{tpu_custom_call.1} parent=5 // pred_check_branch
        %333 = sbr.rel (%p331) target = $region48
      $region47: #{tpu_custom_call.1} parent=5 // pred_region
        // Predicated region
        $region49: #{tpu_custom_call.1} parent=47 // pred_check
          %p334 = pneg %p45
        $region50: #{tpu_custom_call.1} parent=47 // pred_check_branch
          %336 = sbr.rel (%p334) target = $region52
        $region51: #{tpu_custom_call.1} parent=47 // pred_region
          %s337 = sand.u32 %s35, 1
          %s338 = scalar_lea.sflag [#allocation3], %s337
          %s339 = sand.u32 %s35, 1
          %s340 = smul.addr %s339, 16
          %s341 = scalar_lea.vmem [#allocation2], %s340
          %s342 = smul.u32 2, %s25
          %s344 = ssub.s32 256, 256
          %345 = vsyncadd %s338, %s344
          %s346 = smul.addr %s342, 128
          %s347 = scalar_lea.hbm %s0, %s346
          %s348 = sshll.u32 %s341, 4
          %s349 = int_to_ptr.vmem [resolvable:$true] %s348
          %354 = dma.hbm_to_vmem [thread:$0]  %s347, 256, %s349, %s338, 128, 128, 8
        $region52: #{tpu_custom_call.1} parent=47 // pred_fallthru
          _
      $region48: #{tpu_custom_call.1} parent=5 // pred_fallthru
        _
      %p355 = scmp.le.s32.totalorder 1, %s25
      %p356 = scmp.lt.s32.totalorder %s25, 3
      %p357 = pnand %p355, %p356
      %p358 = pneg %p357
      // Predicated region
      $region53: #{tpu_custom_call.1} parent=5 // pred_check
        _
      $region54: #{tpu_custom_call.1} parent=5 // pred_check_branch
        %360 = sbr.rel (%p357) target = $region56
      $region55: #{tpu_custom_call.1} parent=5 // pred_region
        %s361 = ssub.s32 %s25, 1
        %s362 = sand.u32 %s38, 1
        %s363 = scalar_lea.sflag [#allocation3], %s362
        %s364 = sand.u32 %s38, 1
        %s365 = smul.addr %s364, 16
        %s366 = scalar_lea.vmem [#allocation2], %s365
        // Predicated region
        $region57: #{tpu_custom_call.1} parent=55 // pred_check
          %p367 = pneg %p51
        $region58: #{tpu_custom_call.1} parent=55 // pred_check_branch
          %369 = sbr.rel (%p367) target = $region60
        $region59: #{tpu_custom_call.1} parent=55 // pred_region
          %370 = dma.done %s363, 256
        $region60: #{tpu_custom_call.1} parent=55 // pred_fallthru
          _
        // Predicated region
        $region61: #{tpu_custom_call.1} parent=55 // pred_check
          %p371 = pneg %p72
        $region62: #{tpu_custom_call.1} parent=55 // pred_check_branch
          %373 = sbr.rel (%p371) target = $region64
        $region63: #{tpu_custom_call.1} parent=55 // pred_region
          %374 = dma.done [#allocation7], 2048
        $region64: #{tpu_custom_call.1} parent=55 // pred_fallthru
          _
        // Predicated region
        $region65: #{tpu_custom_call.1} parent=55 // pred_check
          %p375 = pneg %p114
        $region66: #{tpu_custom_call.1} parent=55 // pred_check_branch
          %377 = sbr.rel (%p375) target = $region68
        $region67: #{tpu_custom_call.1} parent=55 // pred_region
          %378 = dma.done [#allocation5], 16
        $region68: #{tpu_custom_call.1} parent=55 // pred_fallthru
          _
        // Predicated region
        $region69: #{tpu_custom_call.1} parent=55 // pred_check
          %p379 = pneg %p135
        $region70: #{tpu_custom_call.1} parent=55 // pred_check_branch
          %381 = sbr.rel (%p379) target = $region72
        $region71: #{tpu_custom_call.1} parent=55 // pred_region
          %382 = dma.done [#allocation7], 2048
        $region72: #{tpu_custom_call.1} parent=55 // pred_fallthru
          _
        // Predicated region
        $region73: #{tpu_custom_call.1} parent=55 // pred_check
          %p383 = pneg %p177
        $region74: #{tpu_custom_call.1} parent=55 // pred_check_branch
          %385 = sbr.rel (%p383) target = $region76
        $region75: #{tpu_custom_call.1} parent=55 // pred_region
          %386 = dma.done [#allocation11], 16
        $region76: #{tpu_custom_call.1} parent=55 // pred_fallthru
          _
        // Predicated region
        $region77: #{tpu_custom_call.1} parent=55 // pred_check
          %p387 = pneg %p198
        $region78: #{tpu_custom_call.1} parent=55 // pred_check_branch
          %389 = sbr.rel (%p387) target = $region80
        $region79: #{tpu_custom_call.1} parent=55 // pred_region
          %390 = dma.done [#allocation13], 2048
        $region80: #{tpu_custom_call.1} parent=55 // pred_fallthru
          _
        %391 = sfence
        %s392 = sand.u32 %s38, 1
        %s393 = scalar_lea.sflag [#allocation3], %s392
        %s394 = sand.u32 %s38, 1
        %s395 = smul.addr %s394, 16
        %s396 = scalar_lea.vmem [#allocation2], %s395
        %p397 = pneg %p51
        %p398 = pneg %p48
        %p399 = pneg %p72
        %p400 = pneg %p69
        %p401 = pneg %p93
        %p402 = pneg %p90
        %p403 = pneg %p114
        %p404 = pneg %p111
        %p405 = pneg %p135
        %p406 = pneg %p132
        %p407 = pneg %p156
        %p408 = pneg %p153
        %p409 = pneg %p177
        %p410 = pneg %p174
        %p411 = pneg %p198
        %p412 = pneg %p195
        %p413 = pneg %p219
        %p414 = pneg %p216
        %p415 = pneg %p245
        %p416 = pneg %p242
        %s417 = sand.u32 %s232, 1
        %s418 = scalar_lea.sflag [#allocation4], %s417
        %s419 = sand.u32 %s232, 1
        %s420 = smul.addr %s419, 16
        %s421 = scalar_lea.vmem [#allocation14], %s420
        %s422 = smul.u32 2, %s30
        %s423 = smul.u32 2, %s30
        %v424 = vld [vmem:[%s366] sm:$0xff]
        %v425 = vld [vmem:[%s366 + $0x8] sm:$0xff]
        %s426 = sld [smem:[#allocation8]]
        %s427 = sld [smem:[#allocation8 + $0x1]]
        %s428 = sld [smem:[#allocation8 + $0x2]]
        %s429 = sld [smem:[#allocation8 + $0x3]]
        %s430 = sld [smem:[#allocation8 + $0x4]]
        %s431 = sld [smem:[#allocation8 + $0x5]]
        %s432 = sld [smem:[#allocation8 + $0x6]]
        %s433 = sld [smem:[#allocation8 + $0x7]]
        %s434 = sld [smem:[#allocation8 + $0x8]]
        %s435 = sld [smem:[#allocation8 + $0x9]]
        %s436 = sld [smem:[#allocation8 + $0xa]]
        %s437 = sld [smem:[#allocation8 + $0xb]]
        %s438 = sld [smem:[#allocation8 + $0xc]]
        %s439 = sld [smem:[#allocation8 + $0xd]]
        %s440 = sld [smem:[#allocation8 + $0xe]]
        %s441 = sld [smem:[#allocation8 + $0xf]]
        %s442 = sld [smem:[#allocation8 + $0x10]]
        %s443 = sld [smem:[#allocation8 + $0x11]]
        %s444 = sld [smem:[#allocation8 + $0x12]]
        %s445 = sld [smem:[#allocation8 + $0x13]]
        %s446 = sld [smem:[#allocation8 + $0x14]]
        %s447 = sld [smem:[#allocation8 + $0x15]]
        %s448 = sld [smem:[#allocation8 + $0x16]]
        %s449 = sld [smem:[#allocation8 + $0x17]]
        %s450 = sld [smem:[#allocation8 + $0x18]]
        %s451 = sld [smem:[#allocation8 + $0x19]]
        %s452 = sld [smem:[#allocation8 + $0x1a]]
        %s453 = sld [smem:[#allocation8 + $0x1b]]
        %v454 = vld [vmem:[#allocation6] sm:$0xff]
        %v455 = vld [vmem:[#allocation6 + $0x8] sm:$0xff]
        %v456 = vld [vmem:[#allocation6 + $0x10] sm:$0xff]
        %v457 = vld [vmem:[#allocation6 + $0x18] sm:$0xff]
        %v458 = vld [vmem:[#allocation6 + $0x20] sm:$0xff]
        %v459 = vld [vmem:[#allocation6 + $0x28] sm:$0xff]
        %v460 = vld [vmem:[#allocation6 + $0x30] sm:$0xff]
        %v461 = vld [vmem:[#allocation6 + $0x38] sm:$0xff]
        %v462 = vld [vmem:[#allocation6 + $0x40] sm:$0xff]
        %v463 = vld [vmem:[#allocation6 + $0x48] sm:$0xff]
        %v464 = vld [vmem:[#allocation6 + $0x50] sm:$0xff]
        %v465 = vld [vmem:[#allocation6 + $0x58] sm:$0xff]
        %v466 = vld [vmem:[#allocation6 + $0x60] sm:$0xff]
        %v467 = vld [vmem:[#allocation6 + $0x68] sm:$0xff]
        %v468 = vld [vmem:[#allocation6 + $0x70] sm:$0xff]
        %v469 = vld [vmem:[#allocation6 + $0x78] sm:$0xff]
        %v470 = vld [vmem:[%s2] sm:$0x1]
        %v472 = vlaneseq
        %v473 = vshrl.u32 %v472, 7
        %v474 = vsub.s32 0, %v473
        %v475 = vrot.slane %v470, %v474
        %477 = vmatprep.subr.mxu0 0.0
        %478 = vmatpush1.msra.mxu0 %v469
        %479 = vmatprep.subr.mxu0 0.0
        %480 = vmatpush1.msra.mxu0 %v468
        %481 = vmatprep.subr.mxu0 0.0
        %482 = vmatpush1.msra.mxu0 %v467
        %483 = vmatprep.subr.mxu0 0.0
        %484 = vmatpush1.msra.mxu0 %v466
        %485 = vmatprep.subr.mxu0 0.0
        %486 = vmatpush1.msra.mxu0 %v465
        %487 = vmatprep.subr.mxu0 0.0
        %488 = vmatpush1.msra.mxu0 %v464
        %489 = vmatprep.subr.mxu0 0.0
        %490 = vmatpush1.msra.mxu0 %v463
        %491 = vmatprep.subr.mxu0 0.0
        %492 = vmatpush1.msra.mxu0 %v462
        %493 = vmatprep.subr.mxu0 0.0
        %494 = vmatpush1.msra.mxu0 %v461
        %495 = vmatprep.subr.mxu0 0.0
        %496 = vmatpush1.msra.mxu0 %v460
        %497 = vmatprep.subr.mxu0 0.0
        %498 = vmatpush1.msra.mxu0 %v459
        %499 = vmatprep.subr.mxu0 0.0
        %500 = vmatpush1.msra.mxu0 %v458
        %501 = vmatprep.subr.mxu0 0.0
        %502 = vmatpush1.msra.mxu0 %v457
        %503 = vmatprep.subr.mxu0 0.0
        %504 = vmatpush1.msra.mxu0 %v456
        %505 = vmatprep.subr.mxu0 0.0
        %506 = vmatpush1.msra.mxu0 %v455
        %507 = vmatprep.subr.mxu0 0.0
        %508 = vmatpush1.msra.mxu0 %v454
        %509 = vmatprep.subr.mxu0 0.0
        %510 = vmatpush2.msra.mxu0 0.0
        %511 = vmatprep.subr.mxu0 0.0
        %512 = vmatpush2.msra.mxu0 0.0
        %513 = vmatprep.subr.mxu0 0.0
        %514 = vmatpush2.msra.mxu0 0.0
        %515 = vmatprep.subr.mxu0 0.0
        %516 = vmatpush2.msra.mxu0 0.0
        %517 = vmatprep.subr.mxu0 0.0
        %518 = vmatpush2.msra.mxu0 0.0
        %519 = vmatprep.subr.mxu0 0.0
        %520 = vmatpush2.msra.mxu0 0.0
        %521 = vmatprep.subr.mxu0 0.0
        %522 = vmatpush2.msra.mxu0 0.0
        %523 = vmatprep.subr.mxu0 0.0
        %524 = vmatpush2.msra.mxu0 0.0
        %525 = vmatprep.subr.mxu0 0.0
        %526 = vmatpush2.msra.mxu0 0.0
        %527 = vmatprep.subr.mxu0 0.0
        %528 = vmatpush2.msra.mxu0 0.0
        %529 = vmatprep.subr.mxu0 0.0
        %530 = vmatpush2.msra.mxu0 0.0
        %531 = vmatprep.subr.mxu0 0.0
        %532 = vmatpush2.msra.mxu0 0.0
        %533 = vmatprep.subr.mxu0 0.0
        %534 = vmatpush2.msra.mxu0 0.0
        %535 = vmatprep.subr.mxu0 0.0
        %536 = vmatpush2.msra.mxu0 0.0
        %537 = vmatprep.subr.mxu0 0.0
        %538 = vmatpush2.msra.mxu0 0.0
        %539 = vmatprep.subr.mxu0 0.0
        %540 = vmatpush2.msra.mxu0 0.0
        %541 = vmatprep.mubr.f32.mxu0 0.0
        %542 = vmatmul.mubr.f32.gmra.mxu0 %v424
        %v543 = vpop.f32.mrf.mxu0
        %v544 = vadd.f32 %v475, %v543
        %v545 = vpop.f32.mrf.mxu0
        %546 = vmatprep.mubr.f32.mxu0 0.0
        %547 = vmatmul.mubr.f32.gmra.mxu0 %v425
        %v548 = vpop.f32.mrf.mxu0
        %v549 = vadd.f32 %v475, %v548
        %v550 = vpop.f32.mrf.mxu0
        %551 = vdwg.mxu0
        %v552 = vmul.f32 %v544, 13.0
        %v553 = vmul.f32 %v549, 13.0
        %v554 = vmax.f32 %v552, 3.0
        %v555 = vmax.f32 %v553, 3.0
        %v556 = vmin.f32 %v554, 9.0
        %v557 = vmin.f32 %v555, 9.0
        %v558 = vfloor.f32 %v556
        %v559 = vfloor.f32 %v557
        %v560 = vsub.f32 %v552, %v558
        %v561 = vsub.f32 %v553, %v559
        %v562 = vstv %s426
        %v563 = vstv %s427
        %v564 = vstv %s428
        %v565 = vstv %s429
        %vm566 = vcmp.eq.f32.partialorder %v558, 4.0
        %vm567 = vcmp.eq.f32.partialorder %v559, 4.0
        %v568 = vstv %s430
        %v569 = vsel %vm566, %v568, %v562
        %v570 = vsel %vm567, %v568, %v562
        %v571 = vstv %s431
        %v572 = vsel %vm566, %v571, %v563
        %v573 = vsel %vm567, %v571, %v563
        %v574 = vstv %s432
        %v575 = vsel %vm566, %v574, %v564
        %v576 = vsel %vm567, %v574, %v564
        %v577 = vstv %s433
        %v578 = vsel %vm566, %v577, %v565
        %v579 = vsel %vm567, %v577, %v565
        %vm580 = vcmp.eq.f32.partialorder %v558, 5.0
        %vm581 = vcmp.eq.f32.partialorder %v559, 5.0
        %v582 = vstv %s434
        %v583 = vsel %vm580, %v582, %v569
        %v584 = vsel %vm581, %v582, %v570
        %v585 = vstv %s435
        %v586 = vsel %vm580, %v585, %v572
        %v587 = vsel %vm581, %v585, %v573
        %v588 = vstv %s436
        %v589 = vsel %vm580, %v588, %v575
        %v590 = vsel %vm581, %v588, %v576
        %v591 = vstv %s437
        %v592 = vsel %vm580, %v591, %v578
        %v593 = vsel %vm581, %v591, %v579
        %vm594 = vcmp.eq.f32.partialorder %v558, 6.0
        %vm595 = vcmp.eq.f32.partialorder %v559, 6.0
        %v596 = vstv %s438
        %v597 = vsel %vm594, %v596, %v583
        %v598 = vsel %vm595, %v596, %v584
        %v599 = vstv %s439
        %v600 = vsel %vm594, %v599, %v586
        %v601 = vsel %vm595, %v599, %v587
        %v602 = vstv %s440
        %v603 = vsel %vm594, %v602, %v589
        %v604 = vsel %vm595, %v602, %v590
        %v605 = vstv %s441
        %v606 = vsel %vm594, %v605, %v592
        %v607 = vsel %vm595, %v605, %v593
        %vm608 = vcmp.eq.f32.partialorder %v558, 7.0
        %vm609 = vcmp.eq.f32.partialorder %v559, 7.0
        %v610 = vstv %s442
        %v611 = vsel %vm608, %v610, %v597
        %v612 = vsel %vm609, %v610, %v598
        %v613 = vstv %s443
        %v614 = vsel %vm608, %v613, %v600
        %v615 = vsel %vm609, %v613, %v601
        %v616 = vstv %s444
        %v617 = vsel %vm608, %v616, %v603
        %v618 = vsel %vm609, %v616, %v604
        %v619 = vstv %s445
        %v620 = vsel %vm608, %v619, %v606
        %v621 = vsel %vm609, %v619, %v607
        %vm622 = vcmp.eq.f32.partialorder %v558, 8.0
        %vm623 = vcmp.eq.f32.partialorder %v559, 8.0
        %v624 = vstv %s446
        %v625 = vsel %vm622, %v624, %v611
        %v626 = vsel %vm623, %v624, %v612
        %v627 = vstv %s447
        %v628 = vsel %vm622, %v627, %v614
        %v629 = vsel %vm623, %v627, %v615
        %v630 = vstv %s448
        %v631 = vsel %vm622, %v630, %v617
        %v632 = vsel %vm623, %v630, %v618
        %v633 = vstv %s449
        %v634 = vsel %vm622, %v633, %v620
        %v635 = vsel %vm623, %v633, %v621
        %vm636 = vcmp.eq.f32.partialorder %v558, 9.0
        %vm637 = vcmp.eq.f32.partialorder %v559, 9.0
        %v638 = vstv %s450
        %v639 = vsel %vm636, %v638, %v625
        %v640 = vsel %vm637, %v638, %v626
        %v641 = vstv %s451
        %v642 = vsel %vm636, %v641, %v628
        %v643 = vsel %vm637, %v641, %v629
        %v644 = vstv %s452
        %v645 = vsel %vm636, %v644, %v631
        %v646 = vsel %vm637, %v644, %v632
        %v647 = vstv %s453
        %v648 = vsel %vm636, %v647, %v634
        %v649 = vsel %vm637, %v647, %v635
        %v650 = vmul.f32 %v648, %v560
        %v651 = vmul.f32 %v649, %v561
        %v652 = vadd.f32 %v650, %v645
        %v653 = vadd.f32 %v651, %v646
        %v654 = vmul.f32 %v652, %v560
        %v655 = vmul.f32 %v653, %v561
        %v656 = vadd.f32 %v654, %v642
        %v657 = vadd.f32 %v655, %v643
        %v658 = vmul.f32 %v656, %v560
        %v659 = vmul.f32 %v657, %v561
        %v660 = vadd.f32 %v658, %v639
        %v661 = vadd.f32 %v659, %v640
        %s662 = sld [smem:[#allocation10]]
        %s663 = sld [smem:[#allocation10 + $0x1]]
        %s664 = sld [smem:[#allocation10 + $0x2]]
        %s665 = sld [smem:[#allocation10 + $0x3]]
        %s666 = sld [smem:[#allocation10 + $0x4]]
        %s667 = sld [smem:[#allocation10 + $0x5]]
        %s668 = sld [smem:[#allocation10 + $0x6]]
        %s669 = sld [smem:[#allocation10 + $0x7]]
        %s670 = sld [smem:[#allocation10 + $0x8]]
        %s671 = sld [smem:[#allocation10 + $0x9]]
        %s672 = sld [smem:[#allocation10 + $0xa]]
        %s673 = sld [smem:[#allocation10 + $0xb]]
        %s674 = sld [smem:[#allocation10 + $0xc]]
        %s675 = sld [smem:[#allocation10 + $0xd]]
        %s676 = sld [smem:[#allocation10 + $0xe]]
        %s677 = sld [smem:[#allocation10 + $0xf]]
        %s678 = sld [smem:[#allocation10 + $0x10]]
        %s679 = sld [smem:[#allocation10 + $0x11]]
        %s680 = sld [smem:[#allocation10 + $0x12]]
        %s681 = sld [smem:[#allocation10 + $0x13]]
        %s682 = sld [smem:[#allocation10 + $0x14]]
        %s683 = sld [smem:[#allocation10 + $0x15]]
        %s684 = sld [smem:[#allocation10 + $0x16]]
        %s685 = sld [smem:[#allocation10 + $0x17]]
        %s686 = sld [smem:[#allocation10 + $0x18]]
        %s687 = sld [smem:[#allocation10 + $0x19]]
        %s688 = sld [smem:[#allocation10 + $0x1a]]
        %s689 = sld [smem:[#allocation10 + $0x1b]]
        %v690 = vld [vmem:[#allocation9] sm:$0xff]
        %v691 = vld [vmem:[#allocation9 + $0x8] sm:$0xff]
        %v692 = vld [vmem:[#allocation9 + $0x10] sm:$0xff]
        %v693 = vld [vmem:[#allocation9 + $0x18] sm:$0xff]
        %v694 = vld [vmem:[#allocation9 + $0x20] sm:$0xff]
        %v695 = vld [vmem:[#allocation9 + $0x28] sm:$0xff]
        %v696 = vld [vmem:[#allocation9 + $0x30] sm:$0xff]
        %v697 = vld [vmem:[#allocation9 + $0x38] sm:$0xff]
        %v698 = vld [vmem:[#allocation9 + $0x40] sm:$0xff]
        %v699 = vld [vmem:[#allocation9 + $0x48] sm:$0xff]
        %v700 = vld [vmem:[#allocation9 + $0x50] sm:$0xff]
        %v701 = vld [vmem:[#allocation9 + $0x58] sm:$0xff]
        %v702 = vld [vmem:[#allocation9 + $0x60] sm:$0xff]
        %v703 = vld [vmem:[#allocation9 + $0x68] sm:$0xff]
        %v704 = vld [vmem:[#allocation9 + $0x70] sm:$0xff]
        %v705 = vld [vmem:[#allocation9 + $0x78] sm:$0xff]
        %v706 = vld [vmem:[%s5] sm:$0x1]
        %v708 = vlaneseq
        %v709 = vshrl.u32 %v708, 7
        %v710 = vsub.s32 0, %v709
        %v711 = vrot.slane %v706, %v710
        %713 = vmatprep.subr.mxu0 0.0
        %714 = vmatpush1.msra.mxu0 %v705
        %715 = vmatprep.subr.mxu0 0.0
        %716 = vmatpush1.msra.mxu0 %v704
        %717 = vmatprep.subr.mxu0 0.0
        %718 = vmatpush1.msra.mxu0 %v703
        %719 = vmatprep.subr.mxu0 0.0
        %720 = vmatpush1.msra.mxu0 %v702
        %721 = vmatprep.subr.mxu0 0.0
        %722 = vmatpush1.msra.mxu0 %v701
        %723 = vmatprep.subr.mxu0 0.0
        %724 = vmatpush1.msra.mxu0 %v700
        %725 = vmatprep.subr.mxu0 0.0
        %726 = vmatpush1.msra.mxu0 %v699
        %727 = vmatprep.subr.mxu0 0.0
        %728 = vmatpush1.msra.mxu0 %v698
        %729 = vmatprep.subr.mxu0 0.0
        %730 = vmatpush1.msra.mxu0 %v697
        %731 = vmatprep.subr.mxu0 0.0
        %732 = vmatpush1.msra.mxu0 %v696
        %733 = vmatprep.subr.mxu0 0.0
        %734 = vmatpush1.msra.mxu0 %v695
        %735 = vmatprep.subr.mxu0 0.0
        %736 = vmatpush1.msra.mxu0 %v694
        %737 = vmatprep.subr.mxu0 0.0
        %738 = vmatpush1.msra.mxu0 %v693
        %739 = vmatprep.subr.mxu0 0.0
        %740 = vmatpush1.msra.mxu0 %v692
        %741 = vmatprep.subr.mxu0 0.0
        %742 = vmatpush1.msra.mxu0 %v691
        %743 = vmatprep.subr.mxu0 0.0
        %744 = vmatpush1.msra.mxu0 %v690
        %745 = vmatprep.subr.mxu0 0.0
        %746 = vmatpush2.msra.mxu0 0.0
        %747 = vmatprep.subr.mxu0 0.0
        %748 = vmatpush2.msra.mxu0 0.0
        %749 = vmatprep.subr.mxu0 0.0
        %750 = vmatpush2.msra.mxu0 0.0
        %751 = vmatprep.subr.mxu0 0.0
        %752 = vmatpush2.msra.mxu0 0.0
        %753 = vmatprep.subr.mxu0 0.0
        %754 = vmatpush2.msra.mxu0 0.0
        %755 = vmatprep.subr.mxu0 0.0
        %756 = vmatpush2.msra.mxu0 0.0
        %757 = vmatprep.subr.mxu0 0.0
        %758 = vmatpush2.msra.mxu0 0.0
        %759 = vmatprep.subr.mxu0 0.0
        %760 = vmatpush2.msra.mxu0 0.0
        %761 = vmatprep.subr.mxu0 0.0
        %762 = vmatpush2.msra.mxu0 0.0
        %763 = vmatprep.subr.mxu0 0.0
        %764 = vmatpush2.msra.mxu0 0.0
        %765 = vmatprep.subr.mxu0 0.0
        %766 = vmatpush2.msra.mxu0 0.0
        %767 = vmatprep.subr.mxu0 0.0
        %768 = vmatpush2.msra.mxu0 0.0
        %769 = vmatprep.subr.mxu0 0.0
        %770 = vmatpush2.msra.mxu0 0.0
        %771 = vmatprep.subr.mxu0 0.0
        %772 = vmatpush2.msra.mxu0 0.0
        %773 = vmatprep.subr.mxu0 0.0
        %774 = vmatpush2.msra.mxu0 0.0
        %775 = vmatprep.subr.mxu0 0.0
        %776 = vmatpush2.msra.mxu0 0.0
        %777 = vmatprep.mubr.f32.mxu0 0.0
        %778 = vmatmul.mubr.f32.gmra.mxu0 %v660
        %v779 = vpop.f32.mrf.mxu0
        %v780 = vadd.f32 %v711, %v779
        %v781 = vpop.f32.mrf.mxu0
        %782 = vmatprep.mubr.f32.mxu0 0.0
        %783 = vmatmul.mubr.f32.gmra.mxu0 %v661
        %v784 = vpop.f32.mrf.mxu0
        %v785 = vadd.f32 %v711, %v784
        %v786 = vpop.f32.mrf.mxu0
        %787 = vdwg.mxu0
        %v788 = vmul.f32 %v780, 13.0
        %v789 = vmul.f32 %v785, 13.0
        %v790 = vmax.f32 %v788, 3.0
        %v791 = vmax.f32 %v789, 3.0
        %v792 = vmin.f32 %v790, 9.0
        %v793 = vmin.f32 %v791, 9.0
        %v794 = vfloor.f32 %v792
        %v795 = vfloor.f32 %v793
        %v796 = vsub.f32 %v788, %v794
        %v797 = vsub.f32 %v789, %v795
        %v798 = vstv %s662
        %v799 = vstv %s663
        %v800 = vstv %s664
        %v801 = vstv %s665
        %vm802 = vcmp.eq.f32.partialorder %v794, 4.0
        %vm803 = vcmp.eq.f32.partialorder %v795, 4.0
        %v804 = vstv %s666
        %v805 = vsel %vm802, %v804, %v798
        %v806 = vsel %vm803, %v804, %v798
        %v807 = vstv %s667
        %v808 = vsel %vm802, %v807, %v799
        %v809 = vsel %vm803, %v807, %v799
        %v810 = vstv %s668
        %v811 = vsel %vm802, %v810, %v800
        %v812 = vsel %vm803, %v810, %v800
        %v813 = vstv %s669
        %v814 = vsel %vm802, %v813, %v801
        %v815 = vsel %vm803, %v813, %v801
        %vm816 = vcmp.eq.f32.partialorder %v794, 5.0
        %vm817 = vcmp.eq.f32.partialorder %v795, 5.0
        %v818 = vstv %s670
        %v819 = vsel %vm816, %v818, %v805
        %v820 = vsel %vm817, %v818, %v806
        %v821 = vstv %s671
        %v822 = vsel %vm816, %v821, %v808
        %v823 = vsel %vm817, %v821, %v809
        %v824 = vstv %s672
        %v825 = vsel %vm816, %v824, %v811
        %v826 = vsel %vm817, %v824, %v812
        %v827 = vstv %s673
        %v828 = vsel %vm816, %v827, %v814
        %v829 = vsel %vm817, %v827, %v815
        %vm830 = vcmp.eq.f32.partialorder %v794, 6.0
        %vm831 = vcmp.eq.f32.partialorder %v795, 6.0
        %v832 = vstv %s674
        %v833 = vsel %vm830, %v832, %v819
        %v834 = vsel %vm831, %v832, %v820
        %v835 = vstv %s675
        %v836 = vsel %vm830, %v835, %v822
        %v837 = vsel %vm831, %v835, %v823
        %v838 = vstv %s676
        %v839 = vsel %vm830, %v838, %v825
        %v840 = vsel %vm831, %v838, %v826
        %v841 = vstv %s677
        %v842 = vsel %vm830, %v841, %v828
        %v843 = vsel %vm831, %v841, %v829
        %vm844 = vcmp.eq.f32.partialorder %v794, 7.0
        %vm845 = vcmp.eq.f32.partialorder %v795, 7.0
        %v846 = vstv %s678
        %v847 = vsel %vm844, %v846, %v833
        %v848 = vsel %vm845, %v846, %v834
        %v849 = vstv %s679
        %v850 = vsel %vm844, %v849, %v836
        %v851 = vsel %vm845, %v849, %v837
        %v852 = vstv %s680
        %v853 = vsel %vm844, %v852, %v839
        %v854 = vsel %vm845, %v852, %v840
        %v855 = vstv %s681
        %v856 = vsel %vm844, %v855, %v842
        %v857 = vsel %vm845, %v855, %v843
        %vm858 = vcmp.eq.f32.partialorder %v794, 8.0
        %vm859 = vcmp.eq.f32.partialorder %v795, 8.0
        %v860 = vstv %s682
        %v861 = vsel %vm858, %v860, %v847
        %v862 = vsel %vm859, %v860, %v848
        %v863 = vstv %s683
        %v864 = vsel %vm858, %v863, %v850
        %v865 = vsel %vm859, %v863, %v851
        %v866 = vstv %s684
        %v867 = vsel %vm858, %v866, %v853
        %v868 = vsel %vm859, %v866, %v854
        %v869 = vstv %s685
        %v870 = vsel %vm858, %v869, %v856
        %v871 = vsel %vm859, %v869, %v857
        %vm872 = vcmp.eq.f32.partialorder %v794, 9.0
        %vm873 = vcmp.eq.f32.partialorder %v795, 9.0
        %v874 = vstv %s686
        %v875 = vsel %vm872, %v874, %v861
        %v876 = vsel %vm873, %v874, %v862
        %v877 = vstv %s687
        %v878 = vsel %vm872, %v877, %v864
        %v879 = vsel %vm873, %v877, %v865
        %v880 = vstv %s688
        %v881 = vsel %vm872, %v880, %v867
        %v882 = vsel %vm873, %v880, %v868
        %v883 = vstv %s689
        %v884 = vsel %vm872, %v883, %v870
        %v885 = vsel %vm873, %v883, %v871
        %v886 = vmul.f32 %v884, %v796
        %v887 = vmul.f32 %v885, %v797
        %v888 = vadd.f32 %v886, %v881
        %v889 = vadd.f32 %v887, %v882
        %v890 = vmul.f32 %v888, %v796
        %v891 = vmul.f32 %v889, %v797
        %v892 = vadd.f32 %v890, %v878
        %v893 = vadd.f32 %v891, %v879
        %v894 = vmul.f32 %v892, %v796
        %v895 = vmul.f32 %v893, %v797
        %v896 = vadd.f32 %v894, %v875
        %v897 = vadd.f32 %v895, %v876
        %v898 = vld [vmem:[#allocation12] sm:$0xff]
        %v899 = vld [vmem:[#allocation12 + $0x8] sm:$0xff]
        %v900 = vld [vmem:[#allocation12 + $0x10] sm:$0xff]
        %v901 = vld [vmem:[#allocation12 + $0x18] sm:$0xff]
        %v902 = vld [vmem:[#allocation12 + $0x20] sm:$0xff]
        %v903 = vld [vmem:[#allocation12 + $0x28] sm:$0xff]
        %v904 = vld [vmem:[#allocation12 + $0x30] sm:$0xff]
        %v905 = vld [vmem:[#allocation12 + $0x38] sm:$0xff]
        %v906 = vld [vmem:[#allocation12 + $0x40] sm:$0xff]
        %v907 = vld [vmem:[#allocation12 + $0x48] sm:$0xff]
        %v908 = vld [vmem:[#allocation12 + $0x50] sm:$0xff]
        %v909 = vld [vmem:[#allocation12 + $0x58] sm:$0xff]
        %v910 = vld [vmem:[#allocation12 + $0x60] sm:$0xff]
        %v911 = vld [vmem:[#allocation12 + $0x68] sm:$0xff]
        %v912 = vld [vmem:[#allocation12 + $0x70] sm:$0xff]
        %v913 = vld [vmem:[#allocation12 + $0x78] sm:$0xff]
        %v914 = vld [vmem:[%s8] sm:$0x1]
        %v916 = vlaneseq
        %v917 = vshrl.u32 %v916, 7
        %v918 = vsub.s32 0, %v917
        %v919 = vrot.slane %v914, %v918
        %921 = vmatprep.subr.mxu0 0.0
        %922 = vmatpush1.msra.mxu0 %v913
        %923 = vmatprep.subr.mxu0 0.0
        %924 = vmatpush1.msra.mxu0 %v912
        %925 = vmatprep.subr.mxu0 0.0
        %926 = vmatpush1.msra.mxu0 %v911
        %927 = vmatprep.subr.mxu0 0.0
        %928 = vmatpush1.msra.mxu0 %v910
        %929 = vmatprep.subr.mxu0 0.0
        %930 = vmatpush1.msra.mxu0 %v909
        %931 = vmatprep.subr.mxu0 0.0
        %932 = vmatpush1.msra.mxu0 %v908
        %933 = vmatprep.subr.mxu0 0.0
        %934 = vmatpush1.msra.mxu0 %v907
        %935 = vmatprep.subr.mxu0 0.0
        %936 = vmatpush1.msra.mxu0 %v906
        %937 = vmatprep.subr.mxu0 0.0
        %938 = vmatpush1.msra.mxu0 %v905
        %939 = vmatprep.subr.mxu0 0.0
        %940 = vmatpush1.msra.mxu0 %v904
        %941 = vmatprep.subr.mxu0 0.0
        %942 = vmatpush1.msra.mxu0 %v903
        %943 = vmatprep.subr.mxu0 0.0
        %944 = vmatpush1.msra.mxu0 %v902
        %945 = vmatprep.subr.mxu0 0.0
        %946 = vmatpush1.msra.mxu0 %v901
        %947 = vmatprep.subr.mxu0 0.0
        %948 = vmatpush1.msra.mxu0 %v900
        %949 = vmatprep.subr.mxu0 0.0
        %950 = vmatpush1.msra.mxu0 %v899
        %951 = vmatprep.subr.mxu0 0.0
        %952 = vmatpush1.msra.mxu0 %v898
        %953 = vmatprep.subr.mxu0 0.0
        %954 = vmatpush2.msra.mxu0 0.0
        %955 = vmatprep.subr.mxu0 0.0
        %956 = vmatpush2.msra.mxu0 0.0
        %957 = vmatprep.subr.mxu0 0.0
        %958 = vmatpush2.msra.mxu0 0.0
        %959 = vmatprep.subr.mxu0 0.0
        %960 = vmatpush2.msra.mxu0 0.0
        %961 = vmatprep.subr.mxu0 0.0
        %962 = vmatpush2.msra.mxu0 0.0
        %963 = vmatprep.subr.mxu0 0.0
        %964 = vmatpush2.msra.mxu0 0.0
        %965 = vmatprep.subr.mxu0 0.0
        %966 = vmatpush2.msra.mxu0 0.0
        %967 = vmatprep.subr.mxu0 0.0
        %968 = vmatpush2.msra.mxu0 0.0
        %969 = vmatprep.subr.mxu0 0.0
        %970 = vmatpush2.msra.mxu0 0.0
        %971 = vmatprep.subr.mxu0 0.0
        %972 = vmatpush2.msra.mxu0 0.0
        %973 = vmatprep.subr.mxu0 0.0
        %974 = vmatpush2.msra.mxu0 0.0
        %975 = vmatprep.subr.mxu0 0.0
        %976 = vmatpush2.msra.mxu0 0.0
        %977 = vmatprep.subr.mxu0 0.0
        %978 = vmatpush2.msra.mxu0 0.0
        %979 = vmatprep.subr.mxu0 0.0
        %980 = vmatpush2.msra.mxu0 0.0
        %981 = vmatprep.subr.mxu0 0.0
        %982 = vmatpush2.msra.mxu0 0.0
        %983 = vmatprep.subr.mxu0 0.0
        %984 = vmatpush2.msra.mxu0 0.0
        %985 = vmatprep.mubr.f32.mxu0 0.0
        %986 = vmatmul.mubr.f32.gmra.mxu0 %v896
        %v987 = vpop.f32.mrf.mxu0
        %v988 = vadd.f32 %v919, %v987
        %v989 = vpop.f32.mrf.mxu0
        %990 = vmatprep.mubr.f32.mxu0 0.0
        %991 = vmatmul.mubr.f32.gmra.mxu0 %v897
        %v992 = vpop.f32.mrf.mxu0
        %v993 = vadd.f32 %v919, %v992
        %v994 = vpop.f32.mrf.mxu0
        %995 = vdwg.mxu0
        %996 = vst [vmem:[%s421] sm:$0xff] %v988
        %997 = vst [vmem:[%s421 + $0x8] sm:$0xff] %v993
        %s998 = sand.u32 %s232, 1
        %s999 = scalar_lea.sflag [#allocation4], %s998
        %s1000 = sand.u32 %s232, 1
        %s1001 = smul.addr %s1000, 16
        %s1002 = scalar_lea.vmem [#allocation14], %s1001
        // Predicated region
        $region81: #{tpu_custom_call.1} parent=55 // pred_check
          %p1003 = pneg %p242
        $region82: #{tpu_custom_call.1} parent=55 // pred_check_branch
          %1005 = sbr.rel (%p1003) target = $region84
        $region83: #{tpu_custom_call.1} parent=55 // pred_region
          %s1006 = smul.u32 2, %s30
          %s1008 = ssub.s32 256, 256
          %1009 = vsyncadd %s999, %s1008
          %s1010 = smul.addr %s1006, 128
          %s1011 = scalar_lea.hbm %s9, %s1010
          %s1012 = sshll.u32 %s1002, 4
          %s1013 = int_to_ptr.vmem [resolvable:$true] %s1012
          %1018 = dma.vmem_to_hbm [thread:$0]  %s1013, 256, %s1011, %s999, 128, 128, 8
        $region84: #{tpu_custom_call.1} parent=55 // pred_fallthru
          _
      $region56: #{tpu_custom_call.1} parent=5 // pred_fallthru
        _
      %p1019 = scmp.le.s32.totalorder 2, %s25
      // Predicated region
      $region85: #{tpu_custom_call.1} parent=5 // pred_check
        %p1020 = pneg %p1019
      $region86: #{tpu_custom_call.1} parent=5 // pred_check_branch
        %1022 = sbr.rel (%p1020) target = $region88
      $region87: #{tpu_custom_call.1} parent=5 // pred_region
        %s1023 = ssub.s32 %s25, 2
        // Predicated region
        $region89: #{tpu_custom_call.1} parent=87 // pred_check
          %p1024 = pneg %p248
        $region90: #{tpu_custom_call.1} parent=87 // pred_check_branch
          %1026 = sbr.rel (%p1024) target = $region92
        $region91: #{tpu_custom_call.1} parent=87 // pred_region
          %s1027 = sand.u32 %s233, 1
          %s1028 = scalar_lea.sflag [#allocation4], %s1027
          %s1029 = sand.u32 %s233, 1
          %s1030 = smul.addr %s1029, 16
          %s1031 = scalar_lea.vmem [#allocation14], %s1030
          %1032 = dma.done %s1028, 256
        $region92: #{tpu_custom_call.1} parent=87 // pred_fallthru
          _
      $region88: #{tpu_custom_call.1} parent=5 // pred_fallthru
        _
    $region6: #{tpu_custom_call.1} parent=1 // loop_footer
      %s29 = sadd.s32 1, %s25
    $region7: #{tpu_custom_call.1} parent=1 // loop_footer_branch
      %24 = sbr.rel target = $region3
    $region8: #{tpu_custom_call.1} parent=1 // loop_exit
      _
    %1033 = vsyncpa [#allocation3], 1
    %s1034 = scalar_lea.sflag [#allocation3], 1
    %1035 = vsyncpa %s1034, 1
    %1036 = vsyncpa [#allocation7], 1
    %1037 = vsyncpa [#allocation13], 1
    %1038 = vsyncpa [#allocation4], 1
    %s1039 = scalar_lea.sflag [#allocation4], 1
    %1040 = vsyncpa %s1039, 1
    %1041 = vsyncpa [#allocation5], 1
    %s1042 = scalar_lea.sflag [#allocation5], 1
    %1043 = vsyncpa %s1042, 1
    %1044 = vsyncpa [#allocation11], 1

</llo_original>
